<compile_context>
chip_gen: v7x
topology: tpu7x:2x2x1
jax: 0.10.0
libtpu: 0.0.40
codegen_flags: <defaults>
</compile_context>

<pallas_src>
import functools

import jax
import jax.numpy as jnp
from jax.experimental import pallas as pl
from jax.experimental.pallas import tpu as pltpu

_LANES = 128


def _round_up(x, m):
    return (x + m - 1) // m * m


def _vmem_budget_bytes():
    """Generation-aware per-grid-step working-set budget (double-buffered)."""
    cap = 64 * 2**20                      # assume the smallest (v7x physical)
    try:
        cap = int(getattr(pltpu.get_tpu_info(), "vmem_capacity_bytes", cap))
    except Exception:
        pass
    # Stay under the scoped-VMEM defaults (16 MiB v5e / 32 MiB v6e,v7x) and
    # never budget more than a quarter of physical VMEM.
    return max(4 * 2**20, min(12 * 2**20, cap // 4))


# -----------------------------------------------------------------------------
# Pallas kernel: one lane-dense MXU matmul + fused BN-shift / residual / ReLU
# -----------------------------------------------------------------------------
def _make_matmul_bn_kernel(has_residual, apply_relu):
    def kernel(x_ref, w_ref, shift_ref, *rest):
        if has_residual:
            res_ref, o_ref = rest
        else:
            (o_ref,) = rest
        # Single fused-K matmul (bf16 operands, f32 accumulation on the MXU).
        acc = jnp.dot(x_ref[0], w_ref[...], preferred_element_type=jnp.float32)
        y = acc + shift_ref[...]                 # eval-BN (scale folded into W)
        if has_residual:
            y = y + res_ref[0].astype(jnp.float32)
        if apply_relu:
            y = jnp.maximum(y, 0.0)
        o_ref[0] = y.astype(o_ref.dtype)
    return kernel


def _fused_matmul_bn(patches, w_kc, shift, *, residual=None, apply_relu=True,
                     out_dtype=jnp.float32):
    """patches : (N, M, Kpad)      bf16  (taps*Cin packed on the lane dim)
       w_kc    : (Kpad, Cout_pad)  bf16  (BN scale already folded in)
       shift   : (1, Cout_pad)     f32
       residual: (N, M, Cout_pad)  float or None
       returns : (N, M, Cout_pad)  out_dtype
    """
    n, m, kpad = patches.shape
    kw, cp = w_kc.shape
    assert kw == kpad and kpad % _LANES == 0 and cp % _LANES == 0

    # ---- generation-aware tile selection ------------------------------------
    tco = 256 if cp % 256 == 0 else _LANES       # full-width MXU N on v6e/v7x
    n_co = cp // tco
    out_isz = jnp.dtype(out_dtype).itemsize
    res_isz = 2 if residual is not None else 0

    def step_bytes(tm_):                          # double-buffered working set
        b = 2 * tm_ * kpad * 2                    # patch tile (bf16)
        b += 2 * kpad * tco * 2                   # weight slab (bf16, resident)
        b += 2 * tm_ * tco * out_isz              # output tile
        b += 2 * tm_ * tco * res_isz              # residual tile (bf16)
        b += 2 * tco * 4                          # shift
        return b

    budget = _vmem_budget_bytes()
    tm = min(512, _round_up(m, 8))
    while tm > 8 and step_bytes(tm) > budget:
        tm = max(8, _round_up(tm // 2, 8))
    vmem_limit = None
    if step_bytes(tm) > budget:                   # huge K only: raise limit,
        vmem_limit = int(min(2 * step_bytes(tm), 40 * 2**20))  # v7x-safe cap

    m_pad = _round_up(m, tm)
    n_sp = m_pad // tm
    if m_pad != m:
        patches = jnp.pad(patches, ((0, 0), (0, m_pad - m), (0, 0)))

    args = [patches, w_kc, shift]
    in_specs = [
        pl.BlockSpec((1, tm, kpad), lambda j, i, s: (i, s, 0)),
        pl.BlockSpec((kpad, tco), lambda j, i, s: (0, j)),  # resident over i,s
        pl.BlockSpec((1, tco), lambda j, i, s: (0, j)),
    ]
    if residual is not None:
        res = residual.astype(jnp.bfloat16)       # bf16 residual stream
        if m_pad != m:
            res = jnp.pad(res, ((0, 0), (0, m_pad - m), (0, 0)))
        args.append(res)
        in_specs.append(pl.BlockSpec((1, tm, tco), lambda j, i, s: (i, s, j)))

    flops = 2 * n * m_pad * kpad * cp
    bytes_accessed = (patches.size * 2 + w_kc.size * 2 + shift.size * 4
                      + n * m_pad * cp * out_isz
                      + (n * m_pad * cp * 2 if residual is not None else 0))

    out = pl.pallas_call(
        _make_matmul_bn_kernel(residual is not None, apply_relu),
        out_shape=jax.ShapeDtypeStruct((n, m_pad, cp), out_dtype),
        grid=(n_co, n, n_sp),
        in_specs=in_specs,
        out_specs=pl.BlockSpec((1, tm, tco), lambda j, i, s: (i, s, j)),
        compiler_params=pltpu.CompilerParams(
            dimension_semantics=("parallel", "parallel", "parallel"),
            vmem_limit_bytes=vmem_limit),
        cost_estimate=pl.CostEstimate(flops=int(flops), transcendentals=0,
                                      bytes_accessed=int(bytes_accessed)),
    )(*args)
    return out[:, :m, :] if m_pad != m else out


# -----------------------------------------------------------------------------
# Layout glue (cheap XLA ops); the hot path is the Pallas matmul above
# -----------------------------------------------------------------------------
def _im2col_3x3(x_nhwc, stride):
    """Pack the nine 3x3 taps (padding=1) on the lane dim:
       (N,H,W,C) -> (N, Ho*Wo, 9*C), at output resolution (no wasted FLOPs)."""
    n, h, w, c = x_nhwc.shape
    ho = (h - 1) // stride + 1
    wo = (w - 1) // stride + 1
    xp = jnp.pad(x_nhwc, ((0, 0), (1, 1), (1, 1), (0, 0)))
    taps = [xp[:, dy::stride, dx::stride, :][:, :ho, :wo, :]
            for dy in range(3) for dx in range(3)]
    return jnp.concatenate(taps, axis=-1).reshape(n, ho * wo, 9 * c), ho, wo


def _pad_lanes(p, kpad):
    return jnp.pad(p, ((0, 0), (0, 0), (0, kpad - p.shape[-1])))


def _prep_weights(w_kc, scale, shift, cout_pad):
    """Fold BN scale into the weights (f32), pad K->mult(128), Cout->cout_pad,
    cast bf16. Returns (w_bf16, shift_f32[1,cout_pad], kpad)."""
    k, cout = w_kc.shape
    kpad = _round_up(k, _LANES)
    w = w_kc * scale[None, :]
    w = jnp.pad(w, ((0, kpad - k), (0, cout_pad - cout))).astype(jnp.bfloat16)
    sh = jnp.pad(shift, (0, cout_pad - cout)).reshape(1, cout_pad)
    return w, sh.astype(jnp.float32), kpad


def _fold_bn(gamma, beta, mean, var, eps=1e-5):
    scale = gamma / jnp.sqrt(var + eps)
    shift = beta - mean * scale
    return scale, shift


# -----------------------------------------------------------------------------
# ResidualBlock forward (NCHW in / NCHW out, like the PyTorch module)
# -----------------------------------------------------------------------------
@functools.partial(jax.jit, static_argnames=("stride",))
def residual_block_forward(x_nchw, params, stride=1):
    x = jnp.transpose(x_nchw, (0, 2, 3, 1)).astype(jnp.float32)     # -> NHWC
    n, h, w, in_c = x.shape
    out_c = params["w1"].shape[-1]
    cp = _round_up(out_c, _LANES)
    x_bf = x.astype(jnp.bfloat16)

    s1, b1 = _fold_bn(*params["bn1"])
    s2, b2 = _fold_bn(*params["bn2"])

    # conv1 + bn1 + relu : one fused-K (= 9*Cin) matmul at output resolution
    p1, ho, wo = _im2col_3x3(x_bf, stride)
    w1, sh1, k1 = _prep_weights(params["w1"].reshape(9 * in_c, out_c), s1, b1, cp)
    h1 = _fused_matmul_bn(_pad_lanes(p1, k1), w1, sh1, apply_relu=True,
                          out_dtype=jnp.bfloat16)                   # (n, mo, cp)
    mo = ho * wo

    # identity branch, produced directly in the (n, mo, cp) layout consumed by
    # the fused conv2 kernel (streamed as bf16)
    if stride != 1 or in_c != out_c:
        sid, bid = _fold_bn(*params["bn_id"])
        pid = x_bf[:, ::stride, ::stride, :][:, :ho, :wo, :].reshape(n, mo, in_c)
        wid, shid, kid = _prep_weights(params["w_id"], sid, bid, cp)
        identity = _fused_matmul_bn(_pad_lanes(pid, kid), wid, shid,
                                    apply_relu=False, out_dtype=jnp.bfloat16)
    else:
        identity = jnp.pad(x_bf, ((0, 0), (0, 0), (0, 0), (0, cp - out_c)))
        identity = identity.reshape(n, mo, cp)

    # conv2 + bn2 + residual add + relu, fully fused in one kernel.
    # h1 is consumed channel-padded: the [..., :out_c] slice fuses into the tap
    # concat (it is a no-op whenever out_c is already a multiple of 128), so
    # there is no extra HBM round trip between the two convs.
    h1_s = h1.reshape(n, ho, wo, cp)[..., :out_c]
    p2, _, _ = _im2col_3x3(h1_s, 1)
    w2, sh2, k2 = _prep_weights(params["w2"].reshape(9 * out_c, out_c), s2, b2, cp)
    out = _fused_matmul_bn(_pad_lanes(p2, k2), w2, sh2, residual=identity,
                           apply_relu=True, out_dtype=jnp.float32)

    out = out.reshape(n, ho, wo, cp)[..., :out_c]
    return jnp.transpose(out, (0, 3, 1, 2))                          # -> NCHW


# -----------------------------------------------------------------------------
# Deterministic parameter init + pure-JAX reference (for verification)
# -----------------------------------------------------------------------------
def _init_bn(key, c):
    k = jax.random.split(key, 4)
    gamma = 1.0 + 0.1 * jax.random.normal(k[0], (c,), jnp.float32)
    beta = 0.1 * jax.random.normal(k[1], (c,), jnp.float32)
    mean = 0.1 * jax.random.normal(k[2], (c,), jnp.float32)
    var = jax.random.uniform(k[3], (c,), jnp.float32, minval=0.5, maxval=1.5)
    return (gamma, beta, mean, var)


def init_params(key, cin, cout, stride):
    k = jax.random.split(key, 6)
    p = {
        "w1": 0.1 * jax.random.normal(k[0], (3, 3, cin, cout), jnp.float32),
        "bn1": _init_bn(k[1], cout),
        "w2": 0.1 * jax.random.normal(k[2], (3, 3, cout, cout), jnp.float32),
        "bn2": _init_bn(k[3], cout),
    }
    if stride != 1 or cin != cout:
        p["w_id"] = 0.1 * jax.random.normal(k[4], (cin, cout), jnp.float32)
        p["bn_id"] = _init_bn(k[5], cout)
    return p


def reference_forward(x_nchw, params, stride, eps=1e-5):
    """Plain-JAX NCHW reference mirroring the PyTorch module (eval-mode BN)."""
    dn = ("NCHW", "HWIO", "NCHW")

    def bn(y, g, b, m, v):
        r = lambda a: a.reshape(1, -1, 1, 1)
        return (y - r(m)) / jnp.sqrt(r(v) + eps) * r(g) + r(b)

    if "w_id" in params:
        cin, cout = params["w_id"].shape
        ident = jax.lax.conv_general_dilated(
            x_nchw, params["w_id"].reshape(1, 1, cin, cout),
            (stride, stride), "VALID", dimension_numbers=dn,
        )
        ident = bn(ident, *params["bn_id"])
    else:
        ident = x_nchw

    h = jax.lax.conv_general_dilated(
        x_nchw, params["w1"], (stride, stride), [(1, 1), (1, 1)],
        dimension_numbers=dn,
    )
    h = jnp.maximum(bn(h, *params["bn1"]), 0.0)
    h = jax.lax.conv_general_dilated(
        h, params["w2"], (1, 1), [(1, 1), (1, 1)], dimension_numbers=dn,
    )
    h = bn(h, *params["bn2"]) + ident
    return jnp.maximum(h, 0.0)


# -----------------------------------------------------------------------------
if __name__ == "__main__":
    key = jax.random.PRNGKey(0)
    kx, kp1, kp2 = jax.random.split(key, 3)

    x = jax.random.normal(kx, (2, 4, 16, 16), jnp.float32)  # NCHW, like PyTorch

    configs = [
        (4, 8, 1, kp1),  # in != out -> identity mapping (1x1 conv + BN) active
        (4, 8, 2, kp2),  # strided variant
    ]
    for cin, cout, stride, kp in configs:
        params = init_params(kp, cin, cout, stride)
        out = jax.block_until_ready(residual_block_forward(x, params, stride=stride))
        ref = reference_forward(x, params, stride)
        assert out.shape == ref.shape, (out.shape, ref.shape)
        # bf16 MXU operands (f32 accumulation) -> loosened tolerance vs f32 ref
        if not jnp.allclose(out, ref, atol=5e-2, rtol=5e-2):
            max_err = jnp.max(jnp.abs(out - ref))
            raise AssertionError(f"Pallas vs reference mismatch, max_err={max_err}")

    print("KERNEL_OK")
</pallas_src>

<mosaic_0001>
module attributes {stable_mosaic.version = 11 : i64} {
  func.func @kernel(%arg0: i32, %arg1: i32, %arg2: i32, %arg3: memref<1x256x128xbf16, #tpu.memory_space<vmem>>, %arg4: memref<128x128xbf16, #tpu.memory_space<vmem>>, %arg5: memref<1x128xf32, #tpu.memory_space<vmem>>, %arg6: memref<1x256x128xbf16, #tpu.memory_space<vmem>>) attributes {dimension_semantics = [#tpu.dimension_semantics<parallel>, #tpu.dimension_semantics<parallel>, #tpu.dimension_semantics<parallel>], iteration_bounds = array<i64: 1, 2, 1>, scalar_prefetch = 0 : i64, scratch_operands = 0 : i64, tpu.core_type = #tpu.core_type<tc>, window_params = [{transform_indices = @transform_0, window_bounds = array<i64: 1, 256, 128>}, {transform_indices = @transform_1, window_bounds = array<i64: 128, 128>}, {transform_indices = @transform_2, window_bounds = array<i64: 1, 128>}, {transform_indices = @transform_3, window_bounds = array<i64: 1, 256, 128>}]} {
    %c0 = arith.constant 0 : index
    %c0_0 = arith.constant 0 : index
    %c0_1 = arith.constant 0 : index
    %0 = vector.load %arg3[%c0, %c0_0, %c0_1] : memref<1x256x128xbf16, #tpu.memory_space<vmem>>, vector<1x256x128xbf16>
    %1 = vector.shape_cast %0 : vector<1x256x128xbf16> to vector<256x128xbf16>
    %c0_2 = arith.constant 0 : index
    %c0_3 = arith.constant 0 : index
    %2 = vector.load %arg4[%c0_2, %c0_3] : memref<128x128xbf16, #tpu.memory_space<vmem>>, vector<128x128xbf16>
    %cst = arith.constant dense<0.000000e+00> : vector<256x128xf32>
    %3 = tpu.matmul %1, %2, %cst {dimension_numbers = #tpu.dot_dimension_numbers<[1], [0], [0], [1], [0, 0, 1, 1], [], []>} : vector<256x128xbf16>, vector<128x128xbf16>, vector<256x128xf32> -> vector<256x128xf32>
    %c0_4 = arith.constant 0 : index
    %c0_5 = arith.constant 0 : index
    %4 = vector.load %arg5[%c0_4, %c0_5] : memref<1x128xf32, #tpu.memory_space<vmem>>, vector<1x128xf32>
    %5 = vector.broadcast %4 : vector<1x128xf32> to vector<256x128xf32>
    %6 = arith.addf %3, %5 : vector<256x128xf32>
    %cst_6 = arith.constant 0.000000e+00 : f32
    %7 = vector.broadcast %cst_6 : f32 to vector<256x128xf32>
    %8 = arith.maximumf %6, %7 : vector<256x128xf32>
    %9 = arith.truncf %8 : vector<256x128xf32> to vector<256x128xbf16>
    %c0_7 = arith.constant 0 : index
    %c0_8 = arith.constant 0 : index
    %c0_9 = arith.constant 0 : index
    %10 = vector.load %arg6[%c0_7, %c0_8, %c0_9] : memref<1x256x128xbf16, #tpu.memory_space<vmem>>, vector<1x256x128xbf16>
    %11 = vector.shape_cast %10 : vector<1x256x128xbf16> to vector<256x128xbf16>
    %12 = vector.shape_cast %9 : vector<256x128xbf16> to vector<1x256x128xbf16>
    tpu.vector_store %arg6[%c0_7, %c0_8, %c0_9], %12 {strides = array<i32>} : memref<1x256x128xbf16, #tpu.memory_space<vmem>>, vector<1x256x128xbf16>,
    return
  }
  func.func @transform_0(%arg0: i32, %arg1: i32, %arg2: i32) -> (i32, i32, i32) {
    %c0_i32 = arith.constant 0 : i32
    %c0_i32_0 = arith.constant 0 : i32
    return %arg1, %arg2, %c0_i32 : i32, i32, i32
  }
  func.func @transform_1(%arg0: i32, %arg1: i32, %arg2: i32) -> (i32, i32) {
    %c0_i32 = arith.constant 0 : i32
    %c0_i32_0 = arith.constant 0 : i32
    return %c0_i32, %arg0 : i32, i32
  }
  func.func @transform_2(%arg0: i32, %arg1: i32, %arg2: i32) -> (i32, i32) {
    %c0_i32 = arith.constant 0 : i32
    %c0_i32_0 = arith.constant 0 : i32
    return %c0_i32, %arg0 : i32, i32
  }
  func.func @transform_3(%arg0: i32, %arg1: i32, %arg2: i32) -> (i32, i32, i32) {
    %c0_i32 = arith.constant 0 : i32
    return %arg1, %arg2, %arg0 : i32, i32, i32
  }
}

module attributes {stable_mosaic.version = 11 : i64} {
  func.func @kernel(%arg0: i32, %arg1: i32, %arg2: i32, %arg3: memref<1x256x128xbf16, #tpu.memory_space<vmem>>, %arg4: memref<128x128xbf16, #tpu.memory_space<vmem>>, %arg5: memref<1x128xf32, #tpu.memory_space<vmem>>, %arg6: memref<1x256x128xbf16, #tpu.memory_space<vmem>>) attributes {dimension_semantics = [#tpu.dimension_semantics<parallel>, #tpu.dimension_semantics<parallel>, #tpu.dimension_semantics<parallel>], iteration_bounds = array<i64: 1, 2, 1>, scalar_prefetch = 0 : i64, scratch_operands = 0 : i64, tpu.core_type = #tpu.core_type<tc>, window_params = [{transform_indices = @transform_0, window_bounds = array<i64: 1, 256, 128>}, {transform_indices = @transform_1, window_bounds = array<i64: 128, 128>}, {transform_indices = @transform_2, window_bounds = array<i64: 1, 128>}, {transform_indices = @transform_3, window_bounds = array<i64: 1, 256, 128>}]} {
    %c0 = arith.constant 0 : index
    %c0_0 = arith.constant 0 : index
    %c0_1 = arith.constant 0 : index
    %0 = vector.load %arg3[%c0, %c0_0, %c0_1] : memref<1x256x128xbf16, #tpu.memory_space<vmem>>, vector<1x256x128xbf16>
    %1 = vector.shape_cast %0 : vector<1x256x128xbf16> to vector<256x128xbf16>
    %c0_2 = arith.constant 0 : index
    %c0_3 = arith.constant 0 : index
    %2 = vector.load %arg4[%c0_2, %c0_3] : memref<128x128xbf16, #tpu.memory_space<vmem>>, vector<128x128xbf16>
    %cst = arith.constant dense<0.000000e+00> : vector<256x128xf32>
    %3 = tpu.matmul %1, %2, %cst {dimension_numbers = #tpu.dot_dimension_numbers<[1], [0], [0], [1], [0, 0, 1, 1], [], []>} : vector<256x128xbf16>, vector<128x128xbf16>, vector<256x128xf32> -> vector<256x128xf32>
    %c0_4 = arith.constant 0 : index
    %c0_5 = arith.constant 0 : index
    %4 = vector.load %arg5[%c0_4, %c0_5] : memref<1x128xf32, #tpu.memory_space<vmem>>, vector<1x128xf32>
    %5 = vector.broadcast %4 : vector<1x128xf32> to vector<256x128xf32>
    %6 = arith.addf %3, %5 : vector<256x128xf32>
    %7 = arith.truncf %6 : vector<256x128xf32> to vector<256x128xbf16>
    %c0_6 = arith.constant 0 : index
    %c0_7 = arith.constant 0 : index
    %c0_8 = arith.constant 0 : index
    %8 = vector.load %arg6[%c0_6, %c0_7, %c0_8] : memref<1x256x128xbf16, #tpu.memory_space<vmem>>, vector<1x256x128xbf16>
    %9 = vector.shape_cast %8 : vector<1x256x128xbf16> to vector<256x128xbf16>
    %10 = vector.shape_cast %7 : vector<256x128xbf16> to vector<1x256x128xbf16>
    tpu.vector_store %arg6[%c0_6, %c0_7, %c0_8], %10 {strides = array<i32>} : memref<1x256x128xbf16, #tpu.memory_space<vmem>>, vector<1x256x128xbf16>,
    return
  }
  func.func @transform_0(%arg0: i32, %arg1: i32, %arg2: i32) -> (i32, i32, i32) {
    %c0_i32 = arith.constant 0 : i32
    %c0_i32_0 = arith.constant 0 : i32
    return %arg1, %arg2, %c0_i32 : i32, i32, i32
  }
  func.func @transform_1(%arg0: i32, %arg1: i32, %arg2: i32) -> (i32, i32) {
    %c0_i32 = arith.constant 0 : i32
    %c0_i32_0 = arith.constant 0 : i32
    return %c0_i32, %arg0 : i32, i32
  }
  func.func @transform_2(%arg0: i32, %arg1: i32, %arg2: i32) -> (i32, i32) {
    %c0_i32 = arith.constant 0 : i32
    %c0_i32_0 = arith.constant 0 : i32
    return %c0_i32, %arg0 : i32, i32
  }
  func.func @transform_3(%arg0: i32, %arg1: i32, %arg2: i32) -> (i32, i32, i32) {
    %c0_i32 = arith.constant 0 : i32
    return %arg1, %arg2, %arg0 : i32, i32, i32
  }
}

module attributes {stable_mosaic.version = 11 : i64} {
  func.func @kernel(%arg0: i32, %arg1: i32, %arg2: i32, %arg3: memref<1x256x128xbf16, #tpu.memory_space<vmem>>, %arg4: memref<128x128xbf16, #tpu.memory_space<vmem>>, %arg5: memref<1x128xf32, #tpu.memory_space<vmem>>, %arg6: memref<1x256x128xbf16, #tpu.memory_space<vmem>>, %arg7: memref<1x256x128xf32, #tpu.memory_space<vmem>>) attributes {dimension_semantics = [#tpu.dimension_semantics<parallel>, #tpu.dimension_semantics<parallel>, #tpu.dimension_semantics<parallel>], iteration_bounds = array<i64: 1, 2, 1>, scalar_prefetch = 0 : i64, scratch_operands = 0 : i64, tpu.core_type = #tpu.core_type<tc>, window_params = [{transform_indices = @transform_0, window_bounds = array<i64: 1, 256, 128>}, {transform_indices = @transform_1, window_bounds = array<i64: 128, 128>}, {transform_indices = @transform_2, window_bounds = array<i64: 1, 128>}, {transform_indices = @transform_3, window_bounds = array<i64: 1, 256, 128>}, {transform_indices = @transform_4, window_bounds = array<i64: 1, 256, 128>}]} {
    %c0 = arith.constant 0 : index
    %c0_0 = arith.constant 0 : index
    %c0_1 = arith.constant 0 : index
    %0 = vector.load %arg3[%c0, %c0_0, %c0_1] : memref<1x256x128xbf16, #tpu.memory_space<vmem>>, vector<1x256x128xbf16>
    %1 = vector.shape_cast %0 : vector<1x256x128xbf16> to vector<256x128xbf16>
    %c0_2 = arith.constant 0 : index
    %c0_3 = arith.constant 0 : index
    %2 = vector.load %arg4[%c0_2, %c0_3] : memref<128x128xbf16, #tpu.memory_space<vmem>>, vector<128x128xbf16>
    %cst = arith.constant dense<0.000000e+00> : vector<256x128xf32>
    %3 = tpu.matmul %1, %2, %cst {dimension_numbers = #tpu.dot_dimension_numbers<[1], [0], [0], [1], [0, 0, 1, 1], [], []>} : vector<256x128xbf16>, vector<128x128xbf16>, vector<256x128xf32> -> vector<256x128xf32>
    %c0_4 = arith.constant 0 : index
    %c0_5 = arith.constant 0 : index
    %4 = vector.load %arg5[%c0_4, %c0_5] : memref<1x128xf32, #tpu.memory_space<vmem>>, vector<1x128xf32>
    %5 = vector.broadcast %4 : vector<1x128xf32> to vector<256x128xf32>
    %6 = arith.addf %3, %5 : vector<256x128xf32>
    %c0_6 = arith.constant 0 : index
    %c0_7 = arith.constant 0 : index
    %c0_8 = arith.constant 0 : index
    %7 = vector.load %arg6[%c0_6, %c0_7, %c0_8] : memref<1x256x128xbf16, #tpu.memory_space<vmem>>, vector<1x256x128xbf16>
    %8 = vector.shape_cast %7 : vector<1x256x128xbf16> to vector<256x128xbf16>
    %9 = arith.extf %8 : vector<256x128xbf16> to vector<256x128xf32>
    %10 = arith.addf %6, %9 : vector<256x128xf32>
    %cst_9 = arith.constant 0.000000e+00 : f32
    %11 = vector.broadcast %cst_9 : f32 to vector<256x128xf32>
    %12 = arith.maximumf %10, %11 : vector<256x128xf32>
    %c0_10 = arith.constant 0 : index
    %c0_11 = arith.constant 0 : index
    %c0_12 = arith.constant 0 : index
    %13 = vector.load %arg7[%c0_10, %c0_11, %c0_12] : memref<1x256x128xf32, #tpu.memory_space<vmem>>, vector<1x256x128xf32>
    %14 = vector.shape_cast %13 : vector<1x256x128xf32> to vector<256x128xf32>
    %15 = vector.shape_cast %12 : vector<256x128xf32> to vector<1x256x128xf32>
    tpu.vector_store %arg7[%c0_10, %c0_11, %c0_12], %15 {strides = array<i32>} : memref<1x256x128xf32, #tpu.memory_space<vmem>>, vector<1x256x128xf32>,
    return
  }
  func.func @transform_0(%arg0: i32, %arg1: i32, %arg2: i32) -> (i32, i32, i32) {
    %c0_i32 = arith.constant 0 : i32
    %c0_i32_0 = arith.constant 0 : i32
    return %arg1, %arg2, %c0_i32 : i32, i32, i32
  }
  func.func @transform_1(%arg0: i32, %arg1: i32, %arg2: i32) -> (i32, i32) {
    %c0_i32 = arith.constant 0 : i32
    %c0_i32_0 = arith.constant 0 : i32
    return %c0_i32, %arg0 : i32, i32
  }
  func.func @transform_2(%arg0: i32, %arg1: i32, %arg2: i32) -> (i32, i32) {
    %c0_i32 = arith.constant 0 : i32
    %c0_i32_0 = arith.constant 0 : i32
    return %c0_i32, %arg0 : i32, i32
  }
  func.func @transform_3(%arg0: i32, %arg1: i32, %arg2: i32) -> (i32, i32, i32) {
    %c0_i32 = arith.constant 0 : i32
    return %arg1, %arg2, %arg0 : i32, i32, i32
  }
  func.func @transform_4(%arg0: i32, %arg1: i32, %arg2: i32) -> (i32, i32, i32) {
    %c0_i32 = arith.constant 0 : i32
    return %arg1, %arg2, %arg0 : i32, i32, i32
  }
}

</mosaic_0001>

<llo_original>
// kernel: residual_block_forward.3
$region0: #{residual_block_forward.3}
  #allocation0 [shape = 'u32[]', space=smem, size = 0x4, offset = 0x4, fixed_abs, tag = 'smem constant byte address 0x4 - core index']
  #allocation1 [shape = 'u32[144,128]{1,0:T(1,128)}', space=vmem, size = 0x12000, scoped, tag = 'internal scratch']
  %s0 = inlined_call_operand.vmem [shape: bf16[2,256,128], index: 0, kind: input, shape index: {}]
  %s1 = inlined_call_operand.vmem [shape: bf16[128,128], index: 1, kind: input, shape index: {}]
  %s2 = inlined_call_operand.vmem [shape: f32[1,128], index: 2, kind: input, shape index: {}]
  %s3 = inlined_call_operand.vmem [shape: bf16[2,256,128], index: 3, kind: output, shape index: {}]
  %s4 = sld [smem:[#allocation0]]
  $region45: #{residual_block_forward.3} parent=0
    _
  %s6 = ssub.s32 1, %s4
  %s7 = scalar_select 0, %s6, %s4
  loop: start=0, step=1, limit=4
  $region2: #{residual_block_forward.3} parent=0 // loop_pre_header
    _
  $region3: #{residual_block_forward.3} parent=0 // loop_header
    %s9 = sphi 0, %s13
    %p10 = scmp.ge.s32.totalorder %s9, 4
    %s16 = sphi 0, %s35
    %s17 = sphi 0, %s31
    %s18 = sphi 0, %s27
    %s19 = sphi 0, %s16
    %s20 = sphi 0, %s17
    %s21 = sphi 0, %s18
    %s22 = sphi 0, %s19
    %s23 = sphi 0, %s20
    %s24 = sphi 0, %s21
    %s40 = sphi 0, %s42
    %s43 = sphi 0, %s40
    %s44 = sphi 0, %s43
    %s60 = sphi 0, %s44
    %s66 = sphi 0, %s68
    %s69 = sphi 0, %s66
    %s70 = sphi 0, %s69
    %s86 = sphi 0, %s70
    %s92 = sphi 0, %s94
    %s95 = sphi 0, %s92
    %s96 = sphi 0, %s95
    %s112 = sphi 0, %s96
    %s122 = sphi 0, %s124
    %s125 = sphi 0, %s122
    %s126 = sphi 0, %s125
    %s142 = sphi 0, %s126
  $region4: #{residual_block_forward.3} parent=0 // loop_header_branch
    %12 = sbr.rel (%p10) target = $region8
  $region5: #{residual_block_forward.3} parent=0 // loop_body
    %s14 = ssub.s32 %s9, 1
    %s15 = ssub.s32 %s9, 2
    %s25 = sadd.s32 1, %s18
    %p26 = scmp.ge.s32.totalorder %s25, 1
    %s27 = scalar_select %p26, 0, %s25
    %s28 = sadd.s32 1, %s17
    %s29 = scalar_select %p26, %s28, %s17
    %p30 = scmp.ge.s32.totalorder %s29, 2
    %s31 = scalar_select %p30, 0, %s29
    %s32 = sadd.s32 1, %s16
    %s33 = scalar_select %p30, %s32, %s16
    %p34 = scmp.ge.s32.totalorder %s33, 1
    %s35 = scalar_select %p34, 0, %s33
    %s36 = ssub.s32 %s17, %s31
    %s37 = ssub.s32 %s18, %s27
    %s38 = sor.u32 %s36, %s37
    %p39 = scmp.eq.s32.totalorder %s38, 0
    %s41 = sadd.s32 %s40, 1
    %s42 = scalar_select %p39, %s40, %s41
    %p45 = pneg %p39
    %p46 = scmp.eq.s32.totalorder %s9, 1
    %p47 = por %p45, %p46
    %p48 = scmp.ne.s32.totalorder %s40, %s43
    %p49 = scmp.eq.s32.totalorder %s9, 0
    %p50 = por %p48, %p49
    %p51 = scmp.ne.s32.totalorder %s40, %s43
    %p52 = scmp.eq.s32.totalorder %s14, 1
    %p53 = por %p51, %p52
    %p54 = scmp.ne.s32.totalorder %s43, %s44
    %p55 = scmp.eq.s32.totalorder %s14, 0
    %p56 = por %p54, %p55
    %p57 = scmp.ne.s32.totalorder %s43, %s44
    %p58 = scmp.eq.s32.totalorder %s15, 1
    %p59 = por %p57, %p58
    %p61 = scmp.ne.s32.totalorder %s44, %s60
    %p62 = scmp.eq.s32.totalorder %s15, 0
    %p63 = por %p61, %p62
    %s64 = ssub.s32 %s16, %s35
    %p65 = scmp.eq.s32.totalorder %s64, 0
    %s67 = sadd.s32 %s66, 1
    %s68 = scalar_select %p65, %s66, %s67
    %p71 = pneg %p65
    %p72 = scmp.eq.s32.totalorder %s9, 1
    %p73 = por %p71, %p72
    %p74 = scmp.ne.s32.totalorder %s66, %s69
    %p75 = scmp.eq.s32.totalorder %s9, 0
    %p76 = por %p74, %p75
    %p77 = scmp.ne.s32.totalorder %s66, %s69
    %p78 = scmp.eq.s32.totalorder %s14, 1
    %p79 = por %p77, %p78
    %p80 = scmp.ne.s32.totalorder %s69, %s70
    %p81 = scmp.eq.s32.totalorder %s14, 0
    %p82 = por %p80, %p81
    %p83 = scmp.ne.s32.totalorder %s69, %s70
    %p84 = scmp.eq.s32.totalorder %s15, 1
    %p85 = por %p83, %p84
    %p87 = scmp.ne.s32.totalorder %s70, %s86
    %p88 = scmp.eq.s32.totalorder %s15, 0
    %p89 = por %p87, %p88
    %s90 = ssub.s32 %s16, %s35
    %p91 = scmp.eq.s32.totalorder %s90, 0
    %s93 = sadd.s32 %s92, 1
    %s94 = scalar_select %p91, %s92, %s93
    %p97 = pneg %p91
    %p98 = scmp.eq.s32.totalorder %s9, 1
    %p99 = por %p97, %p98
    %p100 = scmp.ne.s32.totalorder %s92, %s95
    %p101 = scmp.eq.s32.totalorder %s9, 0
    %p102 = por %p100, %p101
    %p103 = scmp.ne.s32.totalorder %s92, %s95
    %p104 = scmp.eq.s32.totalorder %s14, 1
    %p105 = por %p103, %p104
    %p106 = scmp.ne.s32.totalorder %s95, %s96
    %p107 = scmp.eq.s32.totalorder %s14, 0
    %p108 = por %p106, %p107
    %p109 = scmp.ne.s32.totalorder %s95, %s96
    %p110 = scmp.eq.s32.totalorder %s15, 1
    %p111 = por %p109, %p110
    %p113 = scmp.ne.s32.totalorder %s96, %s112
    %p114 = scmp.eq.s32.totalorder %s15, 0
    %p115 = por %p113, %p114
    %s116 = ssub.s32 %s17, %s31
    %s117 = ssub.s32 %s18, %s27
    %s118 = sor.u32 %s116, %s117
    %s119 = ssub.s32 %s16, %s35
    %s120 = sor.u32 %s118, %s119
    %p121 = scmp.eq.s32.totalorder %s120, 0
    %s123 = sadd.s32 %s122, 1
    %s124 = scalar_select %p121, %s122, %s123
    %p127 = pneg %p121
    %p128 = scmp.eq.s32.totalorder %s9, 1
    %p129 = por %p127, %p128
    %p130 = scmp.ne.s32.totalorder %s122, %s125
    %p131 = scmp.eq.s32.totalorder %s9, 0
    %p132 = por %p130, %p131
    %p133 = scmp.ne.s32.totalorder %s122, %s125
    %p134 = scmp.eq.s32.totalorder %s14, 1
    %p135 = por %p133, %p134
    %p136 = scmp.ne.s32.totalorder %s125, %s126
    %p137 = scmp.eq.s32.totalorder %s14, 0
    %p138 = por %p136, %p137
    %p139 = scmp.ne.s32.totalorder %s125, %s126
    %p140 = scmp.eq.s32.totalorder %s15, 1
    %p141 = por %p139, %p140
    %p143 = scmp.ne.s32.totalorder %s126, %s142
    %p144 = scmp.eq.s32.totalorder %s15, 0
    %p145 = por %p143, %p144
    %p146 = scmp.le.s32.totalorder 1, %s9
    %p147 = scmp.lt.s32.totalorder %s9, 3
    %p148 = pnand %p146, %p147
    %p149 = pneg %p148
    // Predicated region
    $region9: #{residual_block_forward.3} parent=5 // pred_check
      _
    $region10: #{residual_block_forward.3} parent=5 // pred_check_branch
      %151 = sbr.rel (%p148) target = $region12
    $region11: #{residual_block_forward.3} parent=5 // pred_region
      %s152 = ssub.s32 %s9, 1
      // Predicated region
      $region13: #{residual_block_forward.3} parent=11 // pred_check
        %p153 = pneg %p82
      $region14: #{residual_block_forward.3} parent=11 // pred_check_branch
        %155 = sbr.rel (%p153) target = $region16
      $region15: #{residual_block_forward.3} parent=11 // pred_region
        %p156 = scmp.lt.s32.totalorder %s19, 0
        %s157 = scalar_select %p156, %s19, 0
        %s158 = smul.addr %s157, 4
        %s159 = scalar_lea.vmem %s1, %s158
      $region16: #{residual_block_forward.3} parent=11 // pred_fallthru
        _
      // Predicated region
      $region17: #{residual_block_forward.3} parent=11 // pred_check
        %p160 = pneg %p108
      $region18: #{residual_block_forward.3} parent=11 // pred_check_branch
        %162 = sbr.rel (%p160) target = $region20
      $region19: #{residual_block_forward.3} parent=11 // pred_region
        %p163 = scmp.lt.s32.totalorder %s19, 0
        %s164 = scalar_select %p163, %s19, 0
        %s165 = scalar_lea.vmem %s2, %s164
      $region20: #{residual_block_forward.3} parent=11 // pred_fallthru
        _
    $region12: #{residual_block_forward.3} parent=5 // pred_fallthru
      _
    %p166 = scmp.lt.s32.totalorder %s9, 2
    // Predicated region
    $region21: #{residual_block_forward.3} parent=5 // pred_check
      %p167 = pneg %p166
    $region22: #{residual_block_forward.3} parent=5 // pred_check_branch
      %169 = sbr.rel (%p167) target = $region24
    $region23: #{residual_block_forward.3} parent=5 // pred_region
      // Predicated region
      $region25: #{residual_block_forward.3} parent=23 // pred_check
        %p170 = pneg %p50
      $region26: #{residual_block_forward.3} parent=23 // pred_check_branch
        %172 = sbr.rel (%p170) target = $region28
      $region27: #{residual_block_forward.3} parent=23 // pred_region
        %s173 = smul.u32 32, %s18
        %p174 = scmp.lt.s32.totalorder %s17, 1
        %s175 = scalar_select %p174, %s17, 1
        %p176 = scmp.lt.s32.totalorder %s173, 31
        %s177 = scalar_select %p176, %s173, 31
        %s178 = smul.addr %s175, 32
        %s179 = sadd.s32 %s177, %s178
        %s180 = smul.addr %s179, 4
        %s181 = scalar_lea.vmem %s0, %s180
        %s182 = smul.u32 32, %s18
      $region28: #{residual_block_forward.3} parent=23 // pred_fallthru
        _
    $region24: #{residual_block_forward.3} parent=5 // pred_fallthru
      _
    %p183 = scmp.le.s32.totalorder 1, %s9
    %p184 = scmp.lt.s32.totalorder %s9, 3
    %p185 = pnand %p183, %p184
    %p186 = pneg %p185
    // Predicated region
    $region29: #{residual_block_forward.3} parent=5 // pred_check
      _
    $region30: #{residual_block_forward.3} parent=5 // pred_check_branch
      %188 = sbr.rel (%p185) target = $region32
    $region31: #{residual_block_forward.3} parent=5 // pred_region
      %s189 = ssub.s32 %s9, 1
      %s190 = smul.u32 32, %s21
      %p191 = scmp.lt.s32.totalorder %s20, 1
      %s192 = scalar_select %p191, %s20, 1
      %p193 = scmp.lt.s32.totalorder %s190, 31
      %s194 = scalar_select %p193, %s190, 31
      %s195 = smul.addr %s192, 32
      %s196 = sadd.s32 %s194, %s195
      %s197 = smul.addr %s196, 4
      %s198 = scalar_lea.vmem %s0, %s197
      %p199 = pneg %p56
      %p200 = pneg %p53
      %p201 = scmp.lt.s32.totalorder %s19, 0
      %s202 = scalar_select %p201, %s19, 0
      %s203 = smul.addr %s202, 4
      %s204 = scalar_lea.vmem %s1, %s203
      %p205 = pneg %p82
      %p206 = pneg %p79
      %p207 = scmp.lt.s32.totalorder %s19, 0
      %s208 = scalar_select %p207, %s19, 0
      %s209 = scalar_lea.vmem %s2, %s208
      %p210 = pneg %p108
      %p211 = pneg %p105
      %p212 = pneg %p138
      %p213 = pneg %p135
      %s214 = smul.u32 32, %s21
      %p215 = scmp.lt.s32.totalorder %s20, 1
      %s216 = scalar_select %p215, %s20, 1
      %p217 = scmp.lt.s32.totalorder %s214, 31
      %s218 = scalar_select %p217, %s214, 31
      %p219 = scmp.lt.s32.totalorder %s19, 0
      %s220 = scalar_select %p219, %s19, 0
      %s221 = sadd.s32 %s220, %s218
      %s222 = smul.addr %s216, 32
      %s223 = sadd.s32 %s221, %s222
      %s224 = smul.addr %s223, 4
      %s225 = scalar_lea.vmem %s3, %s224
      %s226 = smul.u32 32, %s21
      %p227 = scmp.lt.s32.totalorder %s20, 1
      %s228 = scalar_select %p227, %s20, 1
      %p229 = scmp.lt.s32.totalorder %s226, 31
      %s230 = scalar_select %p229, %s226, 31
      %s231 = smul.addr %s228, 32
      %s232 = sadd.s32 %s230, %s231
      %s233 = smul.addr %s232, 4
      %s234 = scalar_lea.vmem %s0, %s233
      %s235 = smul.u32 32, %s21
      %p236 = scmp.lt.s32.totalorder %s19, 0
      %s237 = scalar_select %p236, %s19, 0
      %s238 = smul.addr %s237, 4
      %s239 = scalar_lea.vmem %s1, %s238
      %p240 = scmp.lt.s32.totalorder %s19, 0
      %s241 = scalar_select %p240, %s19, 0
      %s242 = scalar_lea.vmem %s2, %s241
      %s243 = smul.u32 32, %s21
      %p244 = scmp.lt.s32.totalorder %s20, 1
      %s245 = scalar_select %p244, %s20, 1
      %p246 = scmp.lt.s32.totalorder %s243, 31
      %s247 = scalar_select %p246, %s243, 31
      %p248 = scmp.lt.s32.totalorder %s19, 0
      %s249 = scalar_select %p248, %s19, 0
      %s250 = sadd.s32 %s249, %s247
      %s251 = smul.addr %s245, 32
      %s252 = sadd.s32 %s250, %s251
      %s253 = smul.addr %s252, 4
      %s254 = scalar_lea.vmem %s3, %s253
      %s255 = smul.u32 32, %s21
      %v257 = vld [vmem:[%s234] sm:$0xf]
      %v258 = vld [vmem:[%s234 + $0x4] sm:$0xf]
      %v259 = vld [vmem:[%s234 + $0x8] sm:$0xf]
      %v260 = vld [vmem:[%s234 + $0xc] sm:$0xf]
      %v261 = vld [vmem:[%s234 + $0x10] sm:$0xf]
      %v262 = vld [vmem:[%s234 + $0x14] sm:$0xf]
      %v263 = vld [vmem:[%s234 + $0x18] sm:$0xf]
      %v264 = vld [vmem:[%s234 + $0x1c] sm:$0xf]
      %v265 = vld [vmem:[%s234 + $0x20] sm:$0xf]
      %v266 = vld [vmem:[%s234 + $0x24] sm:$0xf]
      %v267 = vld [vmem:[%s234 + $0x28] sm:$0xf]
      %v268 = vld [vmem:[%s234 + $0x2c] sm:$0xf]
      %v269 = vld [vmem:[%s234 + $0x30] sm:$0xf]
      %v270 = vld [vmem:[%s234 + $0x34] sm:$0xf]
      %v271 = vld [vmem:[%s234 + $0x38] sm:$0xf]
      %v272 = vld [vmem:[%s234 + $0x3c] sm:$0xf]
      %v273 = vld [vmem:[%s234 + $0x40] sm:$0xf]
      %v274 = vld [vmem:[%s234 + $0x44] sm:$0xf]
      %v275 = vld [vmem:[%s234 + $0x48] sm:$0xf]
      %v276 = vld [vmem:[%s234 + $0x4c] sm:$0xf]
      %v277 = vld [vmem:[%s234 + $0x50] sm:$0xf]
      %v278 = vld [vmem:[%s234 + $0x54] sm:$0xf]
      %v279 = vld [vmem:[%s234 + $0x58] sm:$0xf]
      %v280 = vld [vmem:[%s234 + $0x5c] sm:$0xf]
      %v281 = vld [vmem:[%s234 + $0x60] sm:$0xf]
      %v282 = vld [vmem:[%s234 + $0x64] sm:$0xf]
      %v283 = vld [vmem:[%s234 + $0x68] sm:$0xf]
      %v284 = vld [vmem:[%s234 + $0x6c] sm:$0xf]
      %v285 = vld [vmem:[%s234 + $0x70] sm:$0xf]
      %v286 = vld [vmem:[%s234 + $0x74] sm:$0xf]
      %v287 = vld [vmem:[%s234 + $0x78] sm:$0xf]
      %v288 = vld [vmem:[%s234 + $0x7c] sm:$0xf]
      %v289 = vld [vmem:[%s239] sm:$0xf]
      %v290 = vld [vmem:[%s239 + $0x4] sm:$0xf]
      %v291 = vld [vmem:[%s239 + $0x8] sm:$0xf]
      %v292 = vld [vmem:[%s239 + $0xc] sm:$0xf]
      %v293 = vld [vmem:[%s239 + $0x10] sm:$0xf]
      %v294 = vld [vmem:[%s239 + $0x14] sm:$0xf]
      %v295 = vld [vmem:[%s239 + $0x18] sm:$0xf]
      %v296 = vld [vmem:[%s239 + $0x1c] sm:$0xf]
      %v297 = vld [vmem:[%s239 + $0x20] sm:$0xf]
      %v298 = vld [vmem:[%s239 + $0x24] sm:$0xf]
      %v299 = vld [vmem:[%s239 + $0x28] sm:$0xf]
      %v300 = vld [vmem:[%s239 + $0x2c] sm:$0xf]
      %v301 = vld [vmem:[%s239 + $0x30] sm:$0xf]
      %v302 = vld [vmem:[%s239 + $0x34] sm:$0xf]
      %v303 = vld [vmem:[%s239 + $0x38] sm:$0xf]
      %v304 = vld [vmem:[%s239 + $0x3c] sm:$0xf]
      %v305 = vld [vmem:[%s242] sm:$0x1]
      %v307 = vlaneseq
      %v308 = vshrl.u32 %v307, 7
      %v309 = vsub.s32 0, %v308
      %v310 = vrot.slane %v305, %v309
      %v344 = vunpack.c.l.b16 %v257
      %v345 = vunpack.c.l.b16 %v258
      %v346 = vunpack.c.l.b16 %v259
      %v347 = vunpack.c.l.b16 %v260
      %v348 = vunpack.c.l.b16 %v261
      %v349 = vunpack.c.l.b16 %v262
      %v350 = vunpack.c.l.b16 %v263
      %v351 = vunpack.c.l.b16 %v264
      %v352 = vunpack.c.l.b16 %v265
      %v353 = vunpack.c.l.b16 %v266
      %v354 = vunpack.c.l.b16 %v267
      %v355 = vunpack.c.l.b16 %v268
      %v356 = vunpack.c.l.b16 %v269
      %v357 = vunpack.c.l.b16 %v270
      %v358 = vunpack.c.l.b16 %v271
      %v359 = vunpack.c.l.b16 %v272
      %v360 = vunpack.c.l.b16 %v273
      %v361 = vunpack.c.l.b16 %v274
      %v362 = vunpack.c.l.b16 %v275
      %v363 = vunpack.c.l.b16 %v276
      %v364 = vunpack.c.l.b16 %v277
      %v365 = vunpack.c.l.b16 %v278
      %v366 = vunpack.c.l.b16 %v279
      %v367 = vunpack.c.l.b16 %v280
      %v368 = vunpack.c.l.b16 %v281
      %v369 = vunpack.c.l.b16 %v282
      %v370 = vunpack.c.l.b16 %v283
      %v371 = vunpack.c.l.b16 %v284
      %v372 = vunpack.c.l.b16 %v285
      %v373 = vunpack.c.l.b16 %v286
      %v374 = vunpack.c.l.b16 %v287
      %v375 = vunpack.c.l.b16 %v288
      %v376 = vpack.c.b16 %v345, %v344
      %v377 = vpack.c.b16 %v347, %v346
      %v378 = vpack.c.b16 %v349, %v348
      %v379 = vpack.c.b16 %v351, %v350
      %v380 = vpack.c.b16 %v353, %v352
      %v381 = vpack.c.b16 %v355, %v354
      %v382 = vpack.c.b16 %v357, %v356
      %v383 = vpack.c.b16 %v359, %v358
      %v384 = vpack.c.b16 %v361, %v360
      %v385 = vpack.c.b16 %v363, %v362
      %v386 = vpack.c.b16 %v365, %v364
      %v387 = vpack.c.b16 %v367, %v366
      %v388 = vpack.c.b16 %v369, %v368
      %v389 = vpack.c.b16 %v371, %v370
      %v390 = vpack.c.b16 %v373, %v372
      %v391 = vpack.c.b16 %v375, %v374
      %v424 = vunpack.c.l.b16 %v289
      %v425 = vunpack.c.l.b16 %v290
      %v426 = vunpack.c.l.b16 %v291
      %v427 = vunpack.c.l.b16 %v292
      %v428 = vunpack.c.l.b16 %v293
      %v429 = vunpack.c.l.b16 %v294
      %v430 = vunpack.c.l.b16 %v295
      %v431 = vunpack.c.l.b16 %v296
      %v432 = vunpack.c.l.b16 %v297
      %v433 = vunpack.c.l.b16 %v298
      %v434 = vunpack.c.l.b16 %v299
      %v435 = vunpack.c.l.b16 %v300
      %v436 = vunpack.c.l.b16 %v301
      %v437 = vunpack.c.l.b16 %v302
      %v438 = vunpack.c.l.b16 %v303
      %v439 = vunpack.c.l.b16 %v304
      %v440 = vpack.c.b16 %v425, %v424
      %v441 = vpack.c.b16 %v427, %v426
      %v442 = vpack.c.b16 %v429, %v428
      %v443 = vpack.c.b16 %v431, %v430
      %v444 = vpack.c.b16 %v433, %v432
      %v445 = vpack.c.b16 %v435, %v434
      %v446 = vpack.c.b16 %v437, %v436
      %v447 = vpack.c.b16 %v439, %v438
      %456 = vmatprep.subr.bf16.mxu0 0
      %457 = vmatpush1.bf16.msra.mxu0 %v440
      %458 = vmatprep.subr.bf16.mxu0 0
      %459 = vmatpush1.bf16.msra.mxu0 %v441
      %460 = vmatprep.subr.bf16.mxu0 0
      %461 = vmatpush1.bf16.msra.mxu0 %v442
      %462 = vmatprep.subr.bf16.mxu0 0
      %463 = vmatpush1.bf16.msra.mxu0 %v443
      %464 = vmatprep.subr.bf16.mxu0 0
      %465 = vmatpush1.bf16.msra.mxu0 %v444
      %466 = vmatprep.subr.bf16.mxu0 0
      %467 = vmatpush1.bf16.msra.mxu0 %v445
      %468 = vmatprep.subr.bf16.mxu0 0
      %469 = vmatpush1.bf16.msra.mxu0 %v446
      %470 = vmatprep.subr.bf16.mxu0 0
      %471 = vmatpush1.bf16.msra.mxu0 %v447
      %472 = vmatprep.subr.bf16.mxu0 0
      %473 = vmatpush1.bf16.msra.mxu0 0
      %474 = vmatprep.subr.bf16.mxu0 0
      %475 = vmatpush1.bf16.msra.mxu0 0
      %476 = vmatprep.subr.bf16.mxu0 0
      %477 = vmatpush1.bf16.msra.mxu0 0
      %478 = vmatprep.subr.bf16.mxu0 0
      %479 = vmatpush1.bf16.msra.mxu0 0
      %480 = vmatprep.subr.bf16.mxu0 0
      %481 = vmatpush1.bf16.msra.mxu0 0
      %482 = vmatprep.subr.bf16.mxu0 0
      %483 = vmatpush1.bf16.msra.mxu0 0
      %484 = vmatprep.subr.bf16.mxu0 0
      %485 = vmatpush1.bf16.msra.mxu0 0
      %486 = vmatprep.subr.bf16.mxu0 0
      %487 = vmatpush1.bf16.msra.mxu0 0
      %488 = vmatprep.mubr.bf16.mxu0 0
      %489 = vmatmul.mubr.bf16.gmra.mrb[0].mxu0 %v376
      %v490 = vpop.f32.mrb[0].mxu0
      %v491 = vadd.f32 %v310, %v490
      %v492 = vpop.f32.mrb[0].mxu0
      %v493 = vpop.f32.mrb[0].mxu0
      %v494 = vadd.f32 %v310, %v493
      %v495 = vpop.f32.mrb[0].mxu0
      %496 = vmatprep.mubr.bf16.mxu0 0
      %497 = vmatmul.mubr.bf16.gmra.mrb[0].mxu0 %v377
      %v498 = vpop.f32.mrb[0].mxu0
      %v499 = vadd.f32 %v310, %v498
      %v500 = vpop.f32.mrb[0].mxu0
      %v501 = vpop.f32.mrb[0].mxu0
      %v502 = vadd.f32 %v310, %v501
      %v503 = vpop.f32.mrb[0].mxu0
      %504 = vmatprep.mubr.bf16.mxu0 0
      %505 = vmatmul.mubr.bf16.gmra.mrb[0].mxu0 %v378
      %v506 = vpop.f32.mrb[0].mxu0
      %v507 = vadd.f32 %v310, %v506
      %v508 = vpop.f32.mrb[0].mxu0
      %v509 = vpop.f32.mrb[0].mxu0
      %v510 = vadd.f32 %v310, %v509
      %v511 = vpop.f32.mrb[0].mxu0
      %512 = vmatprep.mubr.bf16.mxu0 0
      %513 = vmatmul.mubr.bf16.gmra.mrb[0].mxu0 %v379
      %v514 = vpop.f32.mrb[0].mxu0
      %v515 = vadd.f32 %v310, %v514
      %v516 = vpop.f32.mrb[0].mxu0
      %v517 = vpop.f32.mrb[0].mxu0
      %v518 = vadd.f32 %v310, %v517
      %v519 = vpop.f32.mrb[0].mxu0
      %520 = vmatprep.mubr.bf16.mxu0 0
      %521 = vmatmul.mubr.bf16.gmra.mrb[0].mxu0 %v380
      %v522 = vpop.f32.mrb[0].mxu0
      %v523 = vadd.f32 %v310, %v522
      %v524 = vpop.f32.mrb[0].mxu0
      %v525 = vpop.f32.mrb[0].mxu0
      %v526 = vadd.f32 %v310, %v525
      %v527 = vpop.f32.mrb[0].mxu0
      %528 = vmatprep.mubr.bf16.mxu0 0
      %529 = vmatmul.mubr.bf16.gmra.mrb[0].mxu0 %v381
      %v530 = vpop.f32.mrb[0].mxu0
      %v531 = vadd.f32 %v310, %v530
      %v532 = vpop.f32.mrb[0].mxu0
      %v533 = vpop.f32.mrb[0].mxu0
      %v534 = vadd.f32 %v310, %v533
      %v535 = vpop.f32.mrb[0].mxu0
      %536 = vmatprep.mubr.bf16.mxu0 0
      %537 = vmatmul.mubr.bf16.gmra.mrb[0].mxu0 %v382
      %v538 = vpop.f32.mrb[0].mxu0
      %v539 = vadd.f32 %v310, %v538
      %v540 = vpop.f32.mrb[0].mxu0
      %v541 = vpop.f32.mrb[0].mxu0
      %v542 = vadd.f32 %v310, %v541
      %v543 = vpop.f32.mrb[0].mxu0
      %544 = vmatprep.mubr.bf16.mxu0 0
      %545 = vmatmul.mubr.bf16.gmra.mrb[0].mxu0 %v383
      %v546 = vpop.f32.mrb[0].mxu0
      %v547 = vadd.f32 %v310, %v546
      %v548 = vpop.f32.mrb[0].mxu0
      %v549 = vpop.f32.mrb[0].mxu0
      %v550 = vadd.f32 %v310, %v549
      %v551 = vpop.f32.mrb[0].mxu0
      %552 = vmatprep.mubr.bf16.mxu0 0
      %553 = vmatmul.mubr.bf16.gmra.mrb[0].mxu0 %v384
      %v554 = vpop.f32.mrb[0].mxu0
      %v555 = vadd.f32 %v310, %v554
      %v556 = vpop.f32.mrb[0].mxu0
      %v557 = vpop.f32.mrb[0].mxu0
      %v558 = vadd.f32 %v310, %v557
      %v559 = vpop.f32.mrb[0].mxu0
      %560 = vmatprep.mubr.bf16.mxu0 0
      %561 = vmatmul.mubr.bf16.gmra.mrb[0].mxu0 %v385
      %v562 = vpop.f32.mrb[0].mxu0
      %v563 = vadd.f32 %v310, %v562
      %v564 = vpop.f32.mrb[0].mxu0
      %v565 = vpop.f32.mrb[0].mxu0
      %v566 = vadd.f32 %v310, %v565
      %v567 = vpop.f32.mrb[0].mxu0
      %568 = vmatprep.mubr.bf16.mxu0 0
      %569 = vmatmul.mubr.bf16.gmra.mrb[0].mxu0 %v386
      %v570 = vpop.f32.mrb[0].mxu0
      %v571 = vadd.f32 %v310, %v570
      %v572 = vpop.f32.mrb[0].mxu0
      %v573 = vpop.f32.mrb[0].mxu0
      %v574 = vadd.f32 %v310, %v573
      %v575 = vpop.f32.mrb[0].mxu0
      %576 = vmatprep.mubr.bf16.mxu0 0
      %577 = vmatmul.mubr.bf16.gmra.mrb[0].mxu0 %v387
      %v578 = vpop.f32.mrb[0].mxu0
      %v579 = vadd.f32 %v310, %v578
      %v580 = vpop.f32.mrb[0].mxu0
      %v581 = vpop.f32.mrb[0].mxu0
      %v582 = vadd.f32 %v310, %v581
      %v583 = vpop.f32.mrb[0].mxu0
      %584 = vmatprep.mubr.bf16.mxu0 0
      %585 = vmatmul.mubr.bf16.gmra.mrb[0].mxu0 %v388
      %v586 = vpop.f32.mrb[0].mxu0
      %v587 = vadd.f32 %v310, %v586
      %v588 = vpop.f32.mrb[0].mxu0
      %v589 = vpop.f32.mrb[0].mxu0
      %v590 = vadd.f32 %v310, %v589
      %v591 = vpop.f32.mrb[0].mxu0
      %592 = vmatprep.mubr.bf16.mxu0 0
      %593 = vmatmul.mubr.bf16.gmra.mrb[0].mxu0 %v389
      %v594 = vpop.f32.mrb[0].mxu0
      %v595 = vadd.f32 %v310, %v594
      %v596 = vpop.f32.mrb[0].mxu0
      %v597 = vpop.f32.mrb[0].mxu0
      %v598 = vadd.f32 %v310, %v597
      %v599 = vpop.f32.mrb[0].mxu0
      %600 = vmatprep.mubr.bf16.mxu0 0
      %601 = vmatmul.mubr.bf16.gmra.mrb[0].mxu0 %v390
      %v602 = vpop.f32.mrb[0].mxu0
      %v603 = vadd.f32 %v310, %v602
      %v604 = vpop.f32.mrb[0].mxu0
      %v605 = vpop.f32.mrb[0].mxu0
      %v606 = vadd.f32 %v310, %v605
      %v607 = vpop.f32.mrb[0].mxu0
      %608 = vmatprep.mubr.bf16.mxu0 0
      %609 = vmatmul.mubr.bf16.gmra.mrb[0].mxu0 %v391
      %v610 = vpop.f32.mrb[0].mxu0
      %v611 = vadd.f32 %v310, %v610
      %v612 = vpop.f32.mrb[0].mxu0
      %v613 = vpop.f32.mrb[0].mxu0
      %v614 = vadd.f32 %v310, %v613
      %v615 = vpop.f32.mrb[0].mxu0
      %616 = vdwg.mxu0
      %v617 = vmax.f32 %v491, 0.0
      %v618 = vmax.f32 %v494, 0.0
      %v619 = vmax.f32 %v499, 0.0
      %v620 = vmax.f32 %v502, 0.0
      %v621 = vmax.f32 %v507, 0.0
      %v622 = vmax.f32 %v510, 0.0
      %v623 = vmax.f32 %v515, 0.0
      %v624 = vmax.f32 %v518, 0.0
      %v625 = vmax.f32 %v523, 0.0
      %v626 = vmax.f32 %v526, 0.0
      %v627 = vmax.f32 %v531, 0.0
      %v628 = vmax.f32 %v534, 0.0
      %v629 = vmax.f32 %v539, 0.0
      %v630 = vmax.f32 %v542, 0.0
      %v631 = vmax.f32 %v547, 0.0
      %v632 = vmax.f32 %v550, 0.0
      %v633 = vmax.f32 %v555, 0.0
      %v634 = vmax.f32 %v558, 0.0
      %v635 = vmax.f32 %v563, 0.0
      %v636 = vmax.f32 %v566, 0.0
      %v637 = vmax.f32 %v571, 0.0
      %v638 = vmax.f32 %v574, 0.0
      %v639 = vmax.f32 %v579, 0.0
      %v640 = vmax.f32 %v582, 0.0
      %v641 = vmax.f32 %v587, 0.0
      %v642 = vmax.f32 %v590, 0.0
      %v643 = vmax.f32 %v595, 0.0
      %v644 = vmax.f32 %v598, 0.0
      %v645 = vmax.f32 %v603, 0.0
      %v646 = vmax.f32 %v606, 0.0
      %v647 = vmax.f32 %v611, 0.0
      %v648 = vmax.f32 %v614, 0.0
      %v649 = vpack.c.bf16 %v618, %v617
      %v650 = vpack.c.bf16 %v620, %v619
      %v651 = vpack.c.bf16 %v622, %v621
      %v652 = vpack.c.bf16 %v624, %v623
      %v653 = vpack.c.bf16 %v626, %v625
      %v654 = vpack.c.bf16 %v628, %v627
      %v655 = vpack.c.bf16 %v630, %v629
      %v656 = vpack.c.bf16 %v632, %v631
      %v657 = vpack.c.bf16 %v634, %v633
      %v658 = vpack.c.bf16 %v636, %v635
      %v659 = vpack.c.bf16 %v638, %v637
      %v660 = vpack.c.bf16 %v640, %v639
      %v661 = vpack.c.bf16 %v642, %v641
      %v662 = vpack.c.bf16 %v644, %v643
      %v663 = vpack.c.bf16 %v646, %v645
      %v664 = vpack.c.bf16 %v648, %v647
      %v681 = vunpack.c.l.b16 %v649
      %v682 = vunpack.c.h.b16 %v649
      %v683 = vunpack.c.l.b16 %v650
      %v684 = vunpack.c.h.b16 %v650
      %v685 = vunpack.c.l.b16 %v651
      %v686 = vunpack.c.h.b16 %v651
      %v687 = vunpack.c.l.b16 %v652
      %v688 = vunpack.c.h.b16 %v652
      %v689 = vunpack.c.l.b16 %v653
      %v690 = vunpack.c.h.b16 %v653
      %v691 = vunpack.c.l.b16 %v654
      %v692 = vunpack.c.h.b16 %v654
      %v693 = vunpack.c.l.b16 %v655
      %v694 = vunpack.c.h.b16 %v655
      %v695 = vunpack.c.l.b16 %v656
      %v696 = vunpack.c.h.b16 %v656
      %v697 = vunpack.c.l.b16 %v657
      %v698 = vunpack.c.h.b16 %v657
      %v699 = vunpack.c.l.b16 %v658
      %v700 = vunpack.c.h.b16 %v658
      %v701 = vunpack.c.l.b16 %v659
      %v702 = vunpack.c.h.b16 %v659
      %v703 = vunpack.c.l.b16 %v660
      %v704 = vunpack.c.h.b16 %v660
      %v705 = vunpack.c.l.b16 %v661
      %v706 = vunpack.c.h.b16 %v661
      %v707 = vunpack.c.l.b16 %v662
      %v708 = vunpack.c.h.b16 %v662
      %v709 = vunpack.c.l.b16 %v663
      %v710 = vunpack.c.h.b16 %v663
      %v711 = vunpack.c.l.b16 %v664
      %v712 = vunpack.c.h.b16 %v664
      %v713 = vpack.c.b16 %v681, %v681
      %v714 = vpack.c.b16 %v682, %v682
      %v715 = vpack.c.b16 %v683, %v683
      %v716 = vpack.c.b16 %v684, %v684
      %v717 = vpack.c.b16 %v685, %v685
      %v718 = vpack.c.b16 %v686, %v686
      %v719 = vpack.c.b16 %v687, %v687
      %v720 = vpack.c.b16 %v688, %v688
      %v721 = vpack.c.b16 %v689, %v689
      %v722 = vpack.c.b16 %v690, %v690
      %v723 = vpack.c.b16 %v691, %v691
      %v724 = vpack.c.b16 %v692, %v692
      %v725 = vpack.c.b16 %v693, %v693
      %v726 = vpack.c.b16 %v694, %v694
      %v727 = vpack.c.b16 %v695, %v695
      %v728 = vpack.c.b16 %v696, %v696
      %v729 = vpack.c.b16 %v697, %v697
      %v730 = vpack.c.b16 %v698, %v698
      %v731 = vpack.c.b16 %v699, %v699
      %v732 = vpack.c.b16 %v700, %v700
      %v733 = vpack.c.b16 %v701, %v701
      %v734 = vpack.c.b16 %v702, %v702
      %v735 = vpack.c.b16 %v703, %v703
      %v736 = vpack.c.b16 %v704, %v704
      %v737 = vpack.c.b16 %v705, %v705
      %v738 = vpack.c.b16 %v706, %v706
      %v739 = vpack.c.b16 %v707, %v707
      %v740 = vpack.c.b16 %v708, %v708
      %v741 = vpack.c.b16 %v709, %v709
      %v742 = vpack.c.b16 %v710, %v710
      %v743 = vpack.c.b16 %v711, %v711
      %v744 = vpack.c.b16 %v712, %v712
      %777 = vst [vmem:[%s254] sm:$0xf] %v713
      %778 = vst [vmem:[%s254 + $0x4] sm:$0xf] %v714
      %779 = vst [vmem:[%s254 + $0x8] sm:$0xf] %v715
      %780 = vst [vmem:[%s254 + $0xc] sm:$0xf] %v716
      %781 = vst [vmem:[%s254 + $0x10] sm:$0xf] %v717
      %782 = vst [vmem:[%s254 + $0x14] sm:$0xf] %v718
      %783 = vst [vmem:[%s254 + $0x18] sm:$0xf] %v719
      %784 = vst [vmem:[%s254 + $0x1c] sm:$0xf] %v720
      %785 = vst [vmem:[%s254 + $0x20] sm:$0xf] %v721
      %786 = vst [vmem:[%s254 + $0x24] sm:$0xf] %v722
      %787 = vst [vmem:[%s254 + $0x28] sm:$0xf] %v723
      %788 = vst [vmem:[%s254 + $0x2c] sm:$0xf] %v724
      %789 = vst [vmem:[%s254 + $0x30] sm:$0xf] %v725
      %790 = vst [vmem:[%s254 + $0x34] sm:$0xf] %v726
      %791 = vst [vmem:[%s254 + $0x38] sm:$0xf] %v727
      %792 = vst [vmem:[%s254 + $0x3c] sm:$0xf] %v728
      %793 = vst [vmem:[%s254 + $0x40] sm:$0xf] %v729
      %794 = vst [vmem:[%s254 + $0x44] sm:$0xf] %v730
      %795 = vst [vmem:[%s254 + $0x48] sm:$0xf] %v731
      %796 = vst [vmem:[%s254 + $0x4c] sm:$0xf] %v732
      %797 = vst [vmem:[%s254 + $0x50] sm:$0xf] %v733
      %798 = vst [vmem:[%s254 + $0x54] sm:$0xf] %v734
      %799 = vst [vmem:[%s254 + $0x58] sm:$0xf] %v735
      %800 = vst [vmem:[%s254 + $0x5c] sm:$0xf] %v736
      %801 = vst [vmem:[%s254 + $0x60] sm:$0xf] %v737
      %802 = vst [vmem:[%s254 + $0x64] sm:$0xf] %v738
      %803 = vst [vmem:[%s254 + $0x68] sm:$0xf] %v739
      %804 = vst [vmem:[%s254 + $0x6c] sm:$0xf] %v740
      %805 = vst [vmem:[%s254 + $0x70] sm:$0xf] %v741
      %806 = vst [vmem:[%s254 + $0x74] sm:$0xf] %v742
      %807 = vst [vmem:[%s254 + $0x78] sm:$0xf] %v743
      %808 = vst [vmem:[%s254 + $0x7c] sm:$0xf] %v744
      %s809 = smul.u32 32, %s21
      %p810 = scmp.lt.s32.totalorder %s20, 1
      %s811 = scalar_select %p810, %s20, 1
      %p812 = scmp.lt.s32.totalorder %s809, 31
      %s813 = scalar_select %p812, %s809, 31
      %p814 = scmp.lt.s32.totalorder %s19, 0
      %s815 = scalar_select %p814, %s19, 0
      %s816 = sadd.s32 %s815, %s813
      %s817 = smul.addr %s811, 32
      %s818 = sadd.s32 %s816, %s817
      %s819 = smul.addr %s818, 4
      %s820 = scalar_lea.vmem %s3, %s819
      // Predicated region
      $region33: #{residual_block_forward.3} parent=31 // pred_check
        %p821 = pneg %p135
      $region34: #{residual_block_forward.3} parent=31 // pred_check_branch
        %823 = sbr.rel (%p821) target = $region36
      $region35: #{residual_block_forward.3} parent=31 // pred_region
        %s824 = smul.u32 32, %s21
      $region36: #{residual_block_forward.3} parent=31 // pred_fallthru
        _
    $region32: #{residual_block_forward.3} parent=5 // pred_fallthru
      _
    %p825 = scmp.le.s32.totalorder 2, %s9
    // Predicated region
    $region37: #{residual_block_forward.3} parent=5 // pred_check
      %p826 = pneg %p825
    $region38: #{residual_block_forward.3} parent=5 // pred_check_branch
      %828 = sbr.rel (%p826) target = $region40
    $region39: #{residual_block_forward.3} parent=5 // pred_region
      %s829 = ssub.s32 %s9, 2
      // Predicated region
      $region41: #{residual_block_forward.3} parent=39 // pred_check
        %p830 = pneg %p141
      $region42: #{residual_block_forward.3} parent=39 // pred_check_branch
        %832 = sbr.rel (%p830) target = $region44
      $region43: #{residual_block_forward.3} parent=39 // pred_region
        %s833 = smul.u32 32, %s24
        %p834 = scmp.lt.s32.totalorder %s23, 1
        %s835 = scalar_select %p834, %s23, 1
        %p836 = scmp.lt.s32.totalorder %s833, 31
        %s837 = scalar_select %p836, %s833, 31
        %p838 = scmp.lt.s32.totalorder %s22, 0
        %s839 = scalar_select %p838, %s22, 0
        %s840 = sadd.s32 %s839, %s837
        %s841 = smul.addr %s835, 32
        %s842 = sadd.s32 %s840, %s841
        %s843 = smul.addr %s842, 4
        %s844 = scalar_lea.vmem %s3, %s843
      $region44: #{residual_block_forward.3} parent=39 // pred_fallthru
        _
    $region40: #{residual_block_forward.3} parent=5 // pred_fallthru
      _
  $region6: #{residual_block_forward.3} parent=0 // loop_footer
    %s13 = sadd.s32 1, %s9
  $region7: #{residual_block_forward.3} parent=0 // loop_footer_branch
    %8 = sbr.rel target = $region3
  $region8: #{residual_block_forward.3} parent=0 // loop_exit
    _

// kernel: residual_block_forward.4
$region0: #{residual_block_forward.4}
  #allocation0 [shape = 'u32[]', space=smem, size = 0x4, offset = 0x4, fixed_abs, tag = 'smem constant byte address 0x4 - core index']
  #allocation1 [shape = 'u32[144,128]{1,0:T(1,128)}', space=vmem, size = 0x12000, scoped, tag = 'internal scratch']
  %s0 = inlined_call_operand.vmem [shape: bf16[2,256,128], index: 0, kind: input, shape index: {}]
  %s1 = inlined_call_operand.vmem [shape: bf16[128,128], index: 1, kind: input, shape index: {}]
  %s2 = inlined_call_operand.vmem [shape: f32[1,128], index: 2, kind: input, shape index: {}]
  %s3 = inlined_call_operand.vmem [shape: bf16[2,256,128], index: 3, kind: output, shape index: {}]
  %s4 = sld [smem:[#allocation0]]
  $region45: #{residual_block_forward.4} parent=0
    _
  %s6 = ssub.s32 1, %s4
  %s7 = scalar_select 0, %s6, %s4
  loop: start=0, step=1, limit=4
  $region2: #{residual_block_forward.4} parent=0 // loop_pre_header
    _
  $region3: #{residual_block_forward.4} parent=0 // loop_header
    %s9 = sphi 0, %s13
    %p10 = scmp.ge.s32.totalorder %s9, 4
    %s16 = sphi 0, %s35
    %s17 = sphi 0, %s31
    %s18 = sphi 0, %s27
    %s19 = sphi 0, %s16
    %s20 = sphi 0, %s17
    %s21 = sphi 0, %s18
    %s22 = sphi 0, %s19
    %s23 = sphi 0, %s20
    %s24 = sphi 0, %s21
    %s40 = sphi 0, %s42
    %s43 = sphi 0, %s40
    %s44 = sphi 0, %s43
    %s60 = sphi 0, %s44
    %s66 = sphi 0, %s68
    %s69 = sphi 0, %s66
    %s70 = sphi 0, %s69
    %s86 = sphi 0, %s70
    %s92 = sphi 0, %s94
    %s95 = sphi 0, %s92
    %s96 = sphi 0, %s95
    %s112 = sphi 0, %s96
    %s122 = sphi 0, %s124
    %s125 = sphi 0, %s122
    %s126 = sphi 0, %s125
    %s142 = sphi 0, %s126
  $region4: #{residual_block_forward.4} parent=0 // loop_header_branch
    %12 = sbr.rel (%p10) target = $region8
  $region5: #{residual_block_forward.4} parent=0 // loop_body
    %s14 = ssub.s32 %s9, 1
    %s15 = ssub.s32 %s9, 2
    %s25 = sadd.s32 1, %s18
    %p26 = scmp.ge.s32.totalorder %s25, 1
    %s27 = scalar_select %p26, 0, %s25
    %s28 = sadd.s32 1, %s17
    %s29 = scalar_select %p26, %s28, %s17
    %p30 = scmp.ge.s32.totalorder %s29, 2
    %s31 = scalar_select %p30, 0, %s29
    %s32 = sadd.s32 1, %s16
    %s33 = scalar_select %p30, %s32, %s16
    %p34 = scmp.ge.s32.totalorder %s33, 1
    %s35 = scalar_select %p34, 0, %s33
    %s36 = ssub.s32 %s17, %s31
    %s37 = ssub.s32 %s18, %s27
    %s38 = sor.u32 %s36, %s37
    %p39 = scmp.eq.s32.totalorder %s38, 0
    %s41 = sadd.s32 %s40, 1
    %s42 = scalar_select %p39, %s40, %s41
    %p45 = pneg %p39
    %p46 = scmp.eq.s32.totalorder %s9, 1
    %p47 = por %p45, %p46
    %p48 = scmp.ne.s32.totalorder %s40, %s43
    %p49 = scmp.eq.s32.totalorder %s9, 0
    %p50 = por %p48, %p49
    %p51 = scmp.ne.s32.totalorder %s40, %s43
    %p52 = scmp.eq.s32.totalorder %s14, 1
    %p53 = por %p51, %p52
    %p54 = scmp.ne.s32.totalorder %s43, %s44
    %p55 = scmp.eq.s32.totalorder %s14, 0
    %p56 = por %p54, %p55
    %p57 = scmp.ne.s32.totalorder %s43, %s44
    %p58 = scmp.eq.s32.totalorder %s15, 1
    %p59 = por %p57, %p58
    %p61 = scmp.ne.s32.totalorder %s44, %s60
    %p62 = scmp.eq.s32.totalorder %s15, 0
    %p63 = por %p61, %p62
    %s64 = ssub.s32 %s16, %s35
    %p65 = scmp.eq.s32.totalorder %s64, 0
    %s67 = sadd.s32 %s66, 1
    %s68 = scalar_select %p65, %s66, %s67
    %p71 = pneg %p65
    %p72 = scmp.eq.s32.totalorder %s9, 1
    %p73 = por %p71, %p72
    %p74 = scmp.ne.s32.totalorder %s66, %s69
    %p75 = scmp.eq.s32.totalorder %s9, 0
    %p76 = por %p74, %p75
    %p77 = scmp.ne.s32.totalorder %s66, %s69
    %p78 = scmp.eq.s32.totalorder %s14, 1
    %p79 = por %p77, %p78
    %p80 = scmp.ne.s32.totalorder %s69, %s70
    %p81 = scmp.eq.s32.totalorder %s14, 0
    %p82 = por %p80, %p81
    %p83 = scmp.ne.s32.totalorder %s69, %s70
    %p84 = scmp.eq.s32.totalorder %s15, 1
    %p85 = por %p83, %p84
    %p87 = scmp.ne.s32.totalorder %s70, %s86
    %p88 = scmp.eq.s32.totalorder %s15, 0
    %p89 = por %p87, %p88
    %s90 = ssub.s32 %s16, %s35
    %p91 = scmp.eq.s32.totalorder %s90, 0
    %s93 = sadd.s32 %s92, 1
    %s94 = scalar_select %p91, %s92, %s93
    %p97 = pneg %p91
    %p98 = scmp.eq.s32.totalorder %s9, 1
    %p99 = por %p97, %p98
    %p100 = scmp.ne.s32.totalorder %s92, %s95
    %p101 = scmp.eq.s32.totalorder %s9, 0
    %p102 = por %p100, %p101
    %p103 = scmp.ne.s32.totalorder %s92, %s95
    %p104 = scmp.eq.s32.totalorder %s14, 1
    %p105 = por %p103, %p104
    %p106 = scmp.ne.s32.totalorder %s95, %s96
    %p107 = scmp.eq.s32.totalorder %s14, 0
    %p108 = por %p106, %p107
    %p109 = scmp.ne.s32.totalorder %s95, %s96
    %p110 = scmp.eq.s32.totalorder %s15, 1
    %p111 = por %p109, %p110
    %p113 = scmp.ne.s32.totalorder %s96, %s112
    %p114 = scmp.eq.s32.totalorder %s15, 0
    %p115 = por %p113, %p114
    %s116 = ssub.s32 %s17, %s31
    %s117 = ssub.s32 %s18, %s27
    %s118 = sor.u32 %s116, %s117
    %s119 = ssub.s32 %s16, %s35
    %s120 = sor.u32 %s118, %s119
    %p121 = scmp.eq.s32.totalorder %s120, 0
    %s123 = sadd.s32 %s122, 1
    %s124 = scalar_select %p121, %s122, %s123
    %p127 = pneg %p121
    %p128 = scmp.eq.s32.totalorder %s9, 1
    %p129 = por %p127, %p128
    %p130 = scmp.ne.s32.totalorder %s122, %s125
    %p131 = scmp.eq.s32.totalorder %s9, 0
    %p132 = por %p130, %p131
    %p133 = scmp.ne.s32.totalorder %s122, %s125
    %p134 = scmp.eq.s32.totalorder %s14, 1
    %p135 = por %p133, %p134
    %p136 = scmp.ne.s32.totalorder %s125, %s126
    %p137 = scmp.eq.s32.totalorder %s14, 0
    %p138 = por %p136, %p137
    %p139 = scmp.ne.s32.totalorder %s125, %s126
    %p140 = scmp.eq.s32.totalorder %s15, 1
    %p141 = por %p139, %p140
    %p143 = scmp.ne.s32.totalorder %s126, %s142
    %p144 = scmp.eq.s32.totalorder %s15, 0
    %p145 = por %p143, %p144
    %p146 = scmp.le.s32.totalorder 1, %s9
    %p147 = scmp.lt.s32.totalorder %s9, 3
    %p148 = pnand %p146, %p147
    %p149 = pneg %p148
    // Predicated region
    $region9: #{residual_block_forward.4} parent=5 // pred_check
      _
    $region10: #{residual_block_forward.4} parent=5 // pred_check_branch
      %151 = sbr.rel (%p148) target = $region12
    $region11: #{residual_block_forward.4} parent=5 // pred_region
      %s152 = ssub.s32 %s9, 1
      // Predicated region
      $region13: #{residual_block_forward.4} parent=11 // pred_check
        %p153 = pneg %p82
      $region14: #{residual_block_forward.4} parent=11 // pred_check_branch
        %155 = sbr.rel (%p153) target = $region16
      $region15: #{residual_block_forward.4} parent=11 // pred_region
        %p156 = scmp.lt.s32.totalorder %s19, 0
        %s157 = scalar_select %p156, %s19, 0
        %s158 = smul.addr %s157, 4
        %s159 = scalar_lea.vmem %s1, %s158
      $region16: #{residual_block_forward.4} parent=11 // pred_fallthru
        _
      // Predicated region
      $region17: #{residual_block_forward.4} parent=11 // pred_check
        %p160 = pneg %p108
      $region18: #{residual_block_forward.4} parent=11 // pred_check_branch
        %162 = sbr.rel (%p160) target = $region20
      $region19: #{residual_block_forward.4} parent=11 // pred_region
        %p163 = scmp.lt.s32.totalorder %s19, 0
        %s164 = scalar_select %p163, %s19, 0
        %s165 = scalar_lea.vmem %s2, %s164
      $region20: #{residual_block_forward.4} parent=11 // pred_fallthru
        _
    $region12: #{residual_block_forward.4} parent=5 // pred_fallthru
      _
    %p166 = scmp.lt.s32.totalorder %s9, 2
    // Predicated region
    $region21: #{residual_block_forward.4} parent=5 // pred_check
      %p167 = pneg %p166
    $region22: #{residual_block_forward.4} parent=5 // pred_check_branch
      %169 = sbr.rel (%p167) target = $region24
    $region23: #{residual_block_forward.4} parent=5 // pred_region
      // Predicated region
      $region25: #{residual_block_forward.4} parent=23 // pred_check
        %p170 = pneg %p50
      $region26: #{residual_block_forward.4} parent=23 // pred_check_branch
        %172 = sbr.rel (%p170) target = $region28
      $region27: #{residual_block_forward.4} parent=23 // pred_region
        %s173 = smul.u32 32, %s18
        %p174 = scmp.lt.s32.totalorder %s17, 1
        %s175 = scalar_select %p174, %s17, 1
        %p176 = scmp.lt.s32.totalorder %s173, 31
        %s177 = scalar_select %p176, %s173, 31
        %s178 = smul.addr %s175, 32
        %s179 = sadd.s32 %s177, %s178
        %s180 = smul.addr %s179, 4
        %s181 = scalar_lea.vmem %s0, %s180
        %s182 = smul.u32 32, %s18
      $region28: #{residual_block_forward.4} parent=23 // pred_fallthru
        _
    $region24: #{residual_block_forward.4} parent=5 // pred_fallthru
      _
    %p183 = scmp.le.s32.totalorder 1, %s9
    %p184 = scmp.lt.s32.totalorder %s9, 3
    %p185 = pnand %p183, %p184
    %p186 = pneg %p185
    // Predicated region
    $region29: #{residual_block_forward.4} parent=5 // pred_check
      _
    $region30: #{residual_block_forward.4} parent=5 // pred_check_branch
      %188 = sbr.rel (%p185) target = $region32
    $region31: #{residual_block_forward.4} parent=5 // pred_region
      %s189 = ssub.s32 %s9, 1
      %s190 = smul.u32 32, %s21
      %p191 = scmp.lt.s32.totalorder %s20, 1
      %s192 = scalar_select %p191, %s20, 1
      %p193 = scmp.lt.s32.totalorder %s190, 31
      %s194 = scalar_select %p193, %s190, 31
      %s195 = smul.addr %s192, 32
      %s196 = sadd.s32 %s194, %s195
      %s197 = smul.addr %s196, 4
      %s198 = scalar_lea.vmem %s0, %s197
      %p199 = pneg %p56
      %p200 = pneg %p53
      %p201 = scmp.lt.s32.totalorder %s19, 0
      %s202 = scalar_select %p201, %s19, 0
      %s203 = smul.addr %s202, 4
      %s204 = scalar_lea.vmem %s1, %s203
      %p205 = pneg %p82
      %p206 = pneg %p79
      %p207 = scmp.lt.s32.totalorder %s19, 0
      %s208 = scalar_select %p207, %s19, 0
      %s209 = scalar_lea.vmem %s2, %s208
      %p210 = pneg %p108
      %p211 = pneg %p105
      %p212 = pneg %p138
      %p213 = pneg %p135
      %s214 = smul.u32 32, %s21
      %p215 = scmp.lt.s32.totalorder %s20, 1
      %s216 = scalar_select %p215, %s20, 1
      %p217 = scmp.lt.s32.totalorder %s214, 31
      %s218 = scalar_select %p217, %s214, 31
      %p219 = scmp.lt.s32.totalorder %s19, 0
      %s220 = scalar_select %p219, %s19, 0
      %s221 = sadd.s32 %s220, %s218
      %s222 = smul.addr %s216, 32
      %s223 = sadd.s32 %s221, %s222
      %s224 = smul.addr %s223, 4
      %s225 = scalar_lea.vmem %s3, %s224
      %s226 = smul.u32 32, %s21
      %p227 = scmp.lt.s32.totalorder %s20, 1
      %s228 = scalar_select %p227, %s20, 1
      %p229 = scmp.lt.s32.totalorder %s226, 31
      %s230 = scalar_select %p229, %s226, 31
      %s231 = smul.addr %s228, 32
      %s232 = sadd.s32 %s230, %s231
      %s233 = smul.addr %s232, 4
      %s234 = scalar_lea.vmem %s0, %s233
      %s235 = smul.u32 32, %s21
      %p236 = scmp.lt.s32.totalorder %s19, 0
      %s237 = scalar_select %p236, %s19, 0
      %s238 = smul.addr %s237, 4
      %s239 = scalar_lea.vmem %s1, %s238
      %p240 = scmp.lt.s32.totalorder %s19, 0
      %s241 = scalar_select %p240, %s19, 0
      %s242 = scalar_lea.vmem %s2, %s241
      %s243 = smul.u32 32, %s21
      %p244 = scmp.lt.s32.totalorder %s20, 1
      %s245 = scalar_select %p244, %s20, 1
      %p246 = scmp.lt.s32.totalorder %s243, 31
      %s247 = scalar_select %p246, %s243, 31
      %p248 = scmp.lt.s32.totalorder %s19, 0
      %s249 = scalar_select %p248, %s19, 0
      %s250 = sadd.s32 %s249, %s247
      %s251 = smul.addr %s245, 32
      %s252 = sadd.s32 %s250, %s251
      %s253 = smul.addr %s252, 4
      %s254 = scalar_lea.vmem %s3, %s253
      %s255 = smul.u32 32, %s21
      %v257 = vld [vmem:[%s234] sm:$0xf]
      %v258 = vld [vmem:[%s234 + $0x4] sm:$0xf]
      %v259 = vld [vmem:[%s234 + $0x8] sm:$0xf]
      %v260 = vld [vmem:[%s234 + $0xc] sm:$0xf]
      %v261 = vld [vmem:[%s234 + $0x10] sm:$0xf]
      %v262 = vld [vmem:[%s234 + $0x14] sm:$0xf]
      %v263 = vld [vmem:[%s234 + $0x18] sm:$0xf]
      %v264 = vld [vmem:[%s234 + $0x1c] sm:$0xf]
      %v265 = vld [vmem:[%s234 + $0x20] sm:$0xf]
      %v266 = vld [vmem:[%s234 + $0x24] sm:$0xf]
      %v267 = vld [vmem:[%s234 + $0x28] sm:$0xf]
      %v268 = vld [vmem:[%s234 + $0x2c] sm:$0xf]
      %v269 = vld [vmem:[%s234 + $0x30] sm:$0xf]
      %v270 = vld [vmem:[%s234 + $0x34] sm:$0xf]
      %v271 = vld [vmem:[%s234 + $0x38] sm:$0xf]
      %v272 = vld [vmem:[%s234 + $0x3c] sm:$0xf]
      %v273 = vld [vmem:[%s234 + $0x40] sm:$0xf]
      %v274 = vld [vmem:[%s234 + $0x44] sm:$0xf]
      %v275 = vld [vmem:[%s234 + $0x48] sm:$0xf]
      %v276 = vld [vmem:[%s234 + $0x4c] sm:$0xf]
      %v277 = vld [vmem:[%s234 + $0x50] sm:$0xf]
      %v278 = vld [vmem:[%s234 + $0x54] sm:$0xf]
      %v279 = vld [vmem:[%s234 + $0x58] sm:$0xf]
      %v280 = vld [vmem:[%s234 + $0x5c] sm:$0xf]
      %v281 = vld [vmem:[%s234 + $0x60] sm:$0xf]
      %v282 = vld [vmem:[%s234 + $0x64] sm:$0xf]
      %v283 = vld [vmem:[%s234 + $0x68] sm:$0xf]
      %v284 = vld [vmem:[%s234 + $0x6c] sm:$0xf]
      %v285 = vld [vmem:[%s234 + $0x70] sm:$0xf]
      %v286 = vld [vmem:[%s234 + $0x74] sm:$0xf]
      %v287 = vld [vmem:[%s234 + $0x78] sm:$0xf]
      %v288 = vld [vmem:[%s234 + $0x7c] sm:$0xf]
      %v289 = vld [vmem:[%s239] sm:$0xf]
      %v290 = vld [vmem:[%s239 + $0x4] sm:$0xf]
      %v291 = vld [vmem:[%s239 + $0x8] sm:$0xf]
      %v292 = vld [vmem:[%s239 + $0xc] sm:$0xf]
      %v293 = vld [vmem:[%s239 + $0x10] sm:$0xf]
      %v294 = vld [vmem:[%s239 + $0x14] sm:$0xf]
      %v295 = vld [vmem:[%s239 + $0x18] sm:$0xf]
      %v296 = vld [vmem:[%s239 + $0x1c] sm:$0xf]
      %v297 = vld [vmem:[%s239 + $0x20] sm:$0xf]
      %v298 = vld [vmem:[%s239 + $0x24] sm:$0xf]
      %v299 = vld [vmem:[%s239 + $0x28] sm:$0xf]
      %v300 = vld [vmem:[%s239 + $0x2c] sm:$0xf]
      %v301 = vld [vmem:[%s239 + $0x30] sm:$0xf]
      %v302 = vld [vmem:[%s239 + $0x34] sm:$0xf]
      %v303 = vld [vmem:[%s239 + $0x38] sm:$0xf]
      %v304 = vld [vmem:[%s239 + $0x3c] sm:$0xf]
      %v305 = vld [vmem:[%s242] sm:$0x1]
      %v307 = vlaneseq
      %v308 = vshrl.u32 %v307, 7
      %v309 = vsub.s32 0, %v308
      %v310 = vrot.slane %v305, %v309
      %v344 = vunpack.c.l.b16 %v257
      %v345 = vunpack.c.l.b16 %v258
      %v346 = vunpack.c.l.b16 %v259
      %v347 = vunpack.c.l.b16 %v260
      %v348 = vunpack.c.l.b16 %v261
      %v349 = vunpack.c.l.b16 %v262
      %v350 = vunpack.c.l.b16 %v263
      %v351 = vunpack.c.l.b16 %v264
      %v352 = vunpack.c.l.b16 %v265
      %v353 = vunpack.c.l.b16 %v266
      %v354 = vunpack.c.l.b16 %v267
      %v355 = vunpack.c.l.b16 %v268
      %v356 = vunpack.c.l.b16 %v269
      %v357 = vunpack.c.l.b16 %v270
      %v358 = vunpack.c.l.b16 %v271
      %v359 = vunpack.c.l.b16 %v272
      %v360 = vunpack.c.l.b16 %v273
      %v361 = vunpack.c.l.b16 %v274
      %v362 = vunpack.c.l.b16 %v275
      %v363 = vunpack.c.l.b16 %v276
      %v364 = vunpack.c.l.b16 %v277
      %v365 = vunpack.c.l.b16 %v278
      %v366 = vunpack.c.l.b16 %v279
      %v367 = vunpack.c.l.b16 %v280
      %v368 = vunpack.c.l.b16 %v281
      %v369 = vunpack.c.l.b16 %v282
      %v370 = vunpack.c.l.b16 %v283
      %v371 = vunpack.c.l.b16 %v284
      %v372 = vunpack.c.l.b16 %v285
      %v373 = vunpack.c.l.b16 %v286
      %v374 = vunpack.c.l.b16 %v287
      %v375 = vunpack.c.l.b16 %v288
      %v376 = vpack.c.b16 %v345, %v344
      %v377 = vpack.c.b16 %v347, %v346
      %v378 = vpack.c.b16 %v349, %v348
      %v379 = vpack.c.b16 %v351, %v350
      %v380 = vpack.c.b16 %v353, %v352
      %v381 = vpack.c.b16 %v355, %v354
      %v382 = vpack.c.b16 %v357, %v356
      %v383 = vpack.c.b16 %v359, %v358
      %v384 = vpack.c.b16 %v361, %v360
      %v385 = vpack.c.b16 %v363, %v362
      %v386 = vpack.c.b16 %v365, %v364
      %v387 = vpack.c.b16 %v367, %v366
      %v388 = vpack.c.b16 %v369, %v368
      %v389 = vpack.c.b16 %v371, %v370
      %v390 = vpack.c.b16 %v373, %v372
      %v391 = vpack.c.b16 %v375, %v374
      %v424 = vunpack.c.l.b16 %v289
      %v425 = vunpack.c.l.b16 %v290
      %v426 = vunpack.c.l.b16 %v291
      %v427 = vunpack.c.l.b16 %v292
      %v428 = vunpack.c.l.b16 %v293
      %v429 = vunpack.c.l.b16 %v294
      %v430 = vunpack.c.l.b16 %v295
      %v431 = vunpack.c.l.b16 %v296
      %v432 = vunpack.c.l.b16 %v297
      %v433 = vunpack.c.l.b16 %v298
      %v434 = vunpack.c.l.b16 %v299
      %v435 = vunpack.c.l.b16 %v300
      %v436 = vunpack.c.l.b16 %v301
      %v437 = vunpack.c.l.b16 %v302
      %v438 = vunpack.c.l.b16 %v303
      %v439 = vunpack.c.l.b16 %v304
      %v440 = vpack.c.b16 %v425, %v424
      %v441 = vpack.c.b16 %v427, %v426
      %v442 = vpack.c.b16 %v429, %v428
      %v443 = vpack.c.b16 %v431, %v430
      %v444 = vpack.c.b16 %v433, %v432
      %v445 = vpack.c.b16 %v435, %v434
      %v446 = vpack.c.b16 %v437, %v436
      %v447 = vpack.c.b16 %v439, %v438
      %456 = vmatprep.subr.bf16.mxu0 0
      %457 = vmatpush1.bf16.msra.mxu0 %v440
      %458 = vmatprep.subr.bf16.mxu0 0
      %459 = vmatpush1.bf16.msra.mxu0 %v441
      %460 = vmatprep.subr.bf16.mxu0 0
      %461 = vmatpush1.bf16.msra.mxu0 %v442
      %462 = vmatprep.subr.bf16.mxu0 0
      %463 = vmatpush1.bf16.msra.mxu0 %v443
      %464 = vmatprep.subr.bf16.mxu0 0
      %465 = vmatpush1.bf16.msra.mxu0 %v444
      %466 = vmatprep.subr.bf16.mxu0 0
      %467 = vmatpush1.bf16.msra.mxu0 %v445
      %468 = vmatprep.subr.bf16.mxu0 0
      %469 = vmatpush1.bf16.msra.mxu0 %v446
      %470 = vmatprep.subr.bf16.mxu0 0
      %471 = vmatpush1.bf16.msra.mxu0 %v447
      %472 = vmatprep.subr.bf16.mxu0 0
      %473 = vmatpush1.bf16.msra.mxu0 0
      %474 = vmatprep.subr.bf16.mxu0 0
      %475 = vmatpush1.bf16.msra.mxu0 0
      %476 = vmatprep.subr.bf16.mxu0 0
      %477 = vmatpush1.bf16.msra.mxu0 0
      %478 = vmatprep.subr.bf16.mxu0 0
      %479 = vmatpush1.bf16.msra.mxu0 0
      %480 = vmatprep.subr.bf16.mxu0 0
      %481 = vmatpush1.bf16.msra.mxu0 0
      %482 = vmatprep.subr.bf16.mxu0 0
      %483 = vmatpush1.bf16.msra.mxu0 0
      %484 = vmatprep.subr.bf16.mxu0 0
      %485 = vmatpush1.bf16.msra.mxu0 0
      %486 = vmatprep.subr.bf16.mxu0 0
      %487 = vmatpush1.bf16.msra.mxu0 0
      %488 = vmatprep.mubr.bf16.mxu0 0
      %489 = vmatmul.mubr.bf16.gmra.mrb[0].mxu0 %v376
      %v490 = vpop.f32.mrb[0].mxu0
      %v491 = vadd.f32 %v310, %v490
      %v492 = vpop.f32.mrb[0].mxu0
      %v493 = vpop.f32.mrb[0].mxu0
      %v494 = vadd.f32 %v310, %v493
      %v495 = vpop.f32.mrb[0].mxu0
      %496 = vmatprep.mubr.bf16.mxu0 0
      %497 = vmatmul.mubr.bf16.gmra.mrb[0].mxu0 %v377
      %v498 = vpop.f32.mrb[0].mxu0
      %v499 = vadd.f32 %v310, %v498
      %v500 = vpop.f32.mrb[0].mxu0
      %v501 = vpop.f32.mrb[0].mxu0
      %v502 = vadd.f32 %v310, %v501
      %v503 = vpop.f32.mrb[0].mxu0
      %504 = vmatprep.mubr.bf16.mxu0 0
      %505 = vmatmul.mubr.bf16.gmra.mrb[0].mxu0 %v378
      %v506 = vpop.f32.mrb[0].mxu0
      %v507 = vadd.f32 %v310, %v506
      %v508 = vpop.f32.mrb[0].mxu0
      %v509 = vpop.f32.mrb[0].mxu0
      %v510 = vadd.f32 %v310, %v509
      %v511 = vpop.f32.mrb[0].mxu0
      %512 = vmatprep.mubr.bf16.mxu0 0
      %513 = vmatmul.mubr.bf16.gmra.mrb[0].mxu0 %v379
      %v514 = vpop.f32.mrb[0].mxu0
      %v515 = vadd.f32 %v310, %v514
      %v516 = vpop.f32.mrb[0].mxu0
      %v517 = vpop.f32.mrb[0].mxu0
      %v518 = vadd.f32 %v310, %v517
      %v519 = vpop.f32.mrb[0].mxu0
      %520 = vmatprep.mubr.bf16.mxu0 0
      %521 = vmatmul.mubr.bf16.gmra.mrb[0].mxu0 %v380
      %v522 = vpop.f32.mrb[0].mxu0
      %v523 = vadd.f32 %v310, %v522
      %v524 = vpop.f32.mrb[0].mxu0
      %v525 = vpop.f32.mrb[0].mxu0
      %v526 = vadd.f32 %v310, %v525
      %v527 = vpop.f32.mrb[0].mxu0
      %528 = vmatprep.mubr.bf16.mxu0 0
      %529 = vmatmul.mubr.bf16.gmra.mrb[0].mxu0 %v381
      %v530 = vpop.f32.mrb[0].mxu0
      %v531 = vadd.f32 %v310, %v530
      %v532 = vpop.f32.mrb[0].mxu0
      %v533 = vpop.f32.mrb[0].mxu0
      %v534 = vadd.f32 %v310, %v533
      %v535 = vpop.f32.mrb[0].mxu0
      %536 = vmatprep.mubr.bf16.mxu0 0
      %537 = vmatmul.mubr.bf16.gmra.mrb[0].mxu0 %v382
      %v538 = vpop.f32.mrb[0].mxu0
      %v539 = vadd.f32 %v310, %v538
      %v540 = vpop.f32.mrb[0].mxu0
      %v541 = vpop.f32.mrb[0].mxu0
      %v542 = vadd.f32 %v310, %v541
      %v543 = vpop.f32.mrb[0].mxu0
      %544 = vmatprep.mubr.bf16.mxu0 0
      %545 = vmatmul.mubr.bf16.gmra.mrb[0].mxu0 %v383
      %v546 = vpop.f32.mrb[0].mxu0
      %v547 = vadd.f32 %v310, %v546
      %v548 = vpop.f32.mrb[0].mxu0
      %v549 = vpop.f32.mrb[0].mxu0
      %v550 = vadd.f32 %v310, %v549
      %v551 = vpop.f32.mrb[0].mxu0
      %552 = vmatprep.mubr.bf16.mxu0 0
      %553 = vmatmul.mubr.bf16.gmra.mrb[0].mxu0 %v384
      %v554 = vpop.f32.mrb[0].mxu0
      %v555 = vadd.f32 %v310, %v554
      %v556 = vpop.f32.mrb[0].mxu0
      %v557 = vpop.f32.mrb[0].mxu0
      %v558 = vadd.f32 %v310, %v557
      %v559 = vpop.f32.mrb[0].mxu0
      %560 = vmatprep.mubr.bf16.mxu0 0
      %561 = vmatmul.mubr.bf16.gmra.mrb[0].mxu0 %v385
      %v562 = vpop.f32.mrb[0].mxu0
      %v563 = vadd.f32 %v310, %v562
      %v564 = vpop.f32.mrb[0].mxu0
      %v565 = vpop.f32.mrb[0].mxu0
      %v566 = vadd.f32 %v310, %v565
      %v567 = vpop.f32.mrb[0].mxu0
      %568 = vmatprep.mubr.bf16.mxu0 0
      %569 = vmatmul.mubr.bf16.gmra.mrb[0].mxu0 %v386
      %v570 = vpop.f32.mrb[0].mxu0
      %v571 = vadd.f32 %v310, %v570
      %v572 = vpop.f32.mrb[0].mxu0
      %v573 = vpop.f32.mrb[0].mxu0
      %v574 = vadd.f32 %v310, %v573
      %v575 = vpop.f32.mrb[0].mxu0
      %576 = vmatprep.mubr.bf16.mxu0 0
      %577 = vmatmul.mubr.bf16.gmra.mrb[0].mxu0 %v387
      %v578 = vpop.f32.mrb[0].mxu0
      %v579 = vadd.f32 %v310, %v578
      %v580 = vpop.f32.mrb[0].mxu0
      %v581 = vpop.f32.mrb[0].mxu0
      %v582 = vadd.f32 %v310, %v581
      %v583 = vpop.f32.mrb[0].mxu0
      %584 = vmatprep.mubr.bf16.mxu0 0
      %585 = vmatmul.mubr.bf16.gmra.mrb[0].mxu0 %v388
      %v586 = vpop.f32.mrb[0].mxu0
      %v587 = vadd.f32 %v310, %v586
      %v588 = vpop.f32.mrb[0].mxu0
      %v589 = vpop.f32.mrb[0].mxu0
      %v590 = vadd.f32 %v310, %v589
      %v591 = vpop.f32.mrb[0].mxu0
      %592 = vmatprep.mubr.bf16.mxu0 0
      %593 = vmatmul.mubr.bf16.gmra.mrb[0].mxu0 %v389
      %v594 = vpop.f32.mrb[0].mxu0
      %v595 = vadd.f32 %v310, %v594
      %v596 = vpop.f32.mrb[0].mxu0
      %v597 = vpop.f32.mrb[0].mxu0
      %v598 = vadd.f32 %v310, %v597
      %v599 = vpop.f32.mrb[0].mxu0
      %600 = vmatprep.mubr.bf16.mxu0 0
      %601 = vmatmul.mubr.bf16.gmra.mrb[0].mxu0 %v390
      %v602 = vpop.f32.mrb[0].mxu0
      %v603 = vadd.f32 %v310, %v602
      %v604 = vpop.f32.mrb[0].mxu0
      %v605 = vpop.f32.mrb[0].mxu0
      %v606 = vadd.f32 %v310, %v605
      %v607 = vpop.f32.mrb[0].mxu0
      %608 = vmatprep.mubr.bf16.mxu0 0
      %609 = vmatmul.mubr.bf16.gmra.mrb[0].mxu0 %v391
      %v610 = vpop.f32.mrb[0].mxu0
      %v611 = vadd.f32 %v310, %v610
      %v612 = vpop.f32.mrb[0].mxu0
      %v613 = vpop.f32.mrb[0].mxu0
      %v614 = vadd.f32 %v310, %v613
      %v615 = vpop.f32.mrb[0].mxu0
      %616 = vdwg.mxu0
      %v617 = vpack.c.bf16 %v494, %v491
      %v618 = vpack.c.bf16 %v502, %v499
      %v619 = vpack.c.bf16 %v510, %v507
      %v620 = vpack.c.bf16 %v518, %v515
      %v621 = vpack.c.bf16 %v526, %v523
      %v622 = vpack.c.bf16 %v534, %v531
      %v623 = vpack.c.bf16 %v542, %v539
      %v624 = vpack.c.bf16 %v550, %v547
      %v625 = vpack.c.bf16 %v558, %v555
      %v626 = vpack.c.bf16 %v566, %v563
      %v627 = vpack.c.bf16 %v574, %v571
      %v628 = vpack.c.bf16 %v582, %v579
      %v629 = vpack.c.bf16 %v590, %v587
      %v630 = vpack.c.bf16 %v598, %v595
      %v631 = vpack.c.bf16 %v606, %v603
      %v632 = vpack.c.bf16 %v614, %v611
      %v649 = vunpack.c.l.b16 %v617
      %v650 = vunpack.c.h.b16 %v617
      %v651 = vunpack.c.l.b16 %v618
      %v652 = vunpack.c.h.b16 %v618
      %v653 = vunpack.c.l.b16 %v619
      %v654 = vunpack.c.h.b16 %v619
      %v655 = vunpack.c.l.b16 %v620
      %v656 = vunpack.c.h.b16 %v620
      %v657 = vunpack.c.l.b16 %v621
      %v658 = vunpack.c.h.b16 %v621
      %v659 = vunpack.c.l.b16 %v622
      %v660 = vunpack.c.h.b16 %v622
      %v661 = vunpack.c.l.b16 %v623
      %v662 = vunpack.c.h.b16 %v623
      %v663 = vunpack.c.l.b16 %v624
      %v664 = vunpack.c.h.b16 %v624
      %v665 = vunpack.c.l.b16 %v625
      %v666 = vunpack.c.h.b16 %v625
      %v667 = vunpack.c.l.b16 %v626
      %v668 = vunpack.c.h.b16 %v626
      %v669 = vunpack.c.l.b16 %v627
      %v670 = vunpack.c.h.b16 %v627
      %v671 = vunpack.c.l.b16 %v628
      %v672 = vunpack.c.h.b16 %v628
      %v673 = vunpack.c.l.b16 %v629
      %v674 = vunpack.c.h.b16 %v629
      %v675 = vunpack.c.l.b16 %v630
      %v676 = vunpack.c.h.b16 %v630
      %v677 = vunpack.c.l.b16 %v631
      %v678 = vunpack.c.h.b16 %v631
      %v679 = vunpack.c.l.b16 %v632
      %v680 = vunpack.c.h.b16 %v632
      %v681 = vpack.c.b16 %v649, %v649
      %v682 = vpack.c.b16 %v650, %v650
      %v683 = vpack.c.b16 %v651, %v651
      %v684 = vpack.c.b16 %v652, %v652
      %v685 = vpack.c.b16 %v653, %v653
      %v686 = vpack.c.b16 %v654, %v654
      %v687 = vpack.c.b16 %v655, %v655
      %v688 = vpack.c.b16 %v656, %v656
      %v689 = vpack.c.b16 %v657, %v657
      %v690 = vpack.c.b16 %v658, %v658
      %v691 = vpack.c.b16 %v659, %v659
      %v692 = vpack.c.b16 %v660, %v660
      %v693 = vpack.c.b16 %v661, %v661
      %v694 = vpack.c.b16 %v662, %v662
      %v695 = vpack.c.b16 %v663, %v663
      %v696 = vpack.c.b16 %v664, %v664
      %v697 = vpack.c.b16 %v665, %v665
      %v698 = vpack.c.b16 %v666, %v666
      %v699 = vpack.c.b16 %v667, %v667
      %v700 = vpack.c.b16 %v668, %v668
      %v701 = vpack.c.b16 %v669, %v669
      %v702 = vpack.c.b16 %v670, %v670
      %v703 = vpack.c.b16 %v671, %v671
      %v704 = vpack.c.b16 %v672, %v672
      %v705 = vpack.c.b16 %v673, %v673
      %v706 = vpack.c.b16 %v674, %v674
      %v707 = vpack.c.b16 %v675, %v675
      %v708 = vpack.c.b16 %v676, %v676
      %v709 = vpack.c.b16 %v677, %v677
      %v710 = vpack.c.b16 %v678, %v678
      %v711 = vpack.c.b16 %v679, %v679
      %v712 = vpack.c.b16 %v680, %v680
      %745 = vst [vmem:[%s254] sm:$0xf] %v681
      %746 = vst [vmem:[%s254 + $0x4] sm:$0xf] %v682
      %747 = vst [vmem:[%s254 + $0x8] sm:$0xf] %v683
      %748 = vst [vmem:[%s254 + $0xc] sm:$0xf] %v684
      %749 = vst [vmem:[%s254 + $0x10] sm:$0xf] %v685
      %750 = vst [vmem:[%s254 + $0x14] sm:$0xf] %v686
      %751 = vst [vmem:[%s254 + $0x18] sm:$0xf] %v687
      %752 = vst [vmem:[%s254 + $0x1c] sm:$0xf] %v688
      %753 = vst [vmem:[%s254 + $0x20] sm:$0xf] %v689
      %754 = vst [vmem:[%s254 + $0x24] sm:$0xf] %v690
      %755 = vst [vmem:[%s254 + $0x28] sm:$0xf] %v691
      %756 = vst [vmem:[%s254 + $0x2c] sm:$0xf] %v692
      %757 = vst [vmem:[%s254 + $0x30] sm:$0xf] %v693
      %758 = vst [vmem:[%s254 + $0x34] sm:$0xf] %v694
      %759 = vst [vmem:[%s254 + $0x38] sm:$0xf] %v695
      %760 = vst [vmem:[%s254 + $0x3c] sm:$0xf] %v696
      %761 = vst [vmem:[%s254 + $0x40] sm:$0xf] %v697
      %762 = vst [vmem:[%s254 + $0x44] sm:$0xf] %v698
      %763 = vst [vmem:[%s254 + $0x48] sm:$0xf] %v699
      %764 = vst [vmem:[%s254 + $0x4c] sm:$0xf] %v700
      %765 = vst [vmem:[%s254 + $0x50] sm:$0xf] %v701
      %766 = vst [vmem:[%s254 + $0x54] sm:$0xf] %v702
      %767 = vst [vmem:[%s254 + $0x58] sm:$0xf] %v703
      %768 = vst [vmem:[%s254 + $0x5c] sm:$0xf] %v704
      %769 = vst [vmem:[%s254 + $0x60] sm:$0xf] %v705
      %770 = vst [vmem:[%s254 + $0x64] sm:$0xf] %v706
      %771 = vst [vmem:[%s254 + $0x68] sm:$0xf] %v707
      %772 = vst [vmem:[%s254 + $0x6c] sm:$0xf] %v708
      %773 = vst [vmem:[%s254 + $0x70] sm:$0xf] %v709
      %774 = vst [vmem:[%s254 + $0x74] sm:$0xf] %v710
      %775 = vst [vmem:[%s254 + $0x78] sm:$0xf] %v711
      %776 = vst [vmem:[%s254 + $0x7c] sm:$0xf] %v712
      %s777 = smul.u32 32, %s21
      %p778 = scmp.lt.s32.totalorder %s20, 1
      %s779 = scalar_select %p778, %s20, 1
      %p780 = scmp.lt.s32.totalorder %s777, 31
      %s781 = scalar_select %p780, %s777, 31
      %p782 = scmp.lt.s32.totalorder %s19, 0
      %s783 = scalar_select %p782, %s19, 0
      %s784 = sadd.s32 %s783, %s781
      %s785 = smul.addr %s779, 32
      %s786 = sadd.s32 %s784, %s785
      %s787 = smul.addr %s786, 4
      %s788 = scalar_lea.vmem %s3, %s787
      // Predicated region
      $region33: #{residual_block_forward.4} parent=31 // pred_check
        %p789 = pneg %p135
      $region34: #{residual_block_forward.4} parent=31 // pred_check_branch
        %791 = sbr.rel (%p789) target = $region36
      $region35: #{residual_block_forward.4} parent=31 // pred_region
        %s792 = smul.u32 32, %s21
      $region36: #{residual_block_forward.4} parent=31 // pred_fallthru
        _
    $region32: #{residual_block_forward.4} parent=5 // pred_fallthru
      _
    %p793 = scmp.le.s32.totalorder 2, %s9
    // Predicated region
    $region37: #{residual_block_forward.4} parent=5 // pred_check
      %p794 = pneg %p793
    $region38: #{residual_block_forward.4} parent=5 // pred_check_branch
      %796 = sbr.rel (%p794) target = $region40
    $region39: #{residual_block_forward.4} parent=5 // pred_region
      %s797 = ssub.s32 %s9, 2
      // Predicated region
      $region41: #{residual_block_forward.4} parent=39 // pred_check
        %p798 = pneg %p141
      $region42: #{residual_block_forward.4} parent=39 // pred_check_branch
        %800 = sbr.rel (%p798) target = $region44
      $region43: #{residual_block_forward.4} parent=39 // pred_region
        %s801 = smul.u32 32, %s24
        %p802 = scmp.lt.s32.totalorder %s23, 1
        %s803 = scalar_select %p802, %s23, 1
        %p804 = scmp.lt.s32.totalorder %s801, 31
        %s805 = scalar_select %p804, %s801, 31
        %p806 = scmp.lt.s32.totalorder %s22, 0
        %s807 = scalar_select %p806, %s22, 0
        %s808 = sadd.s32 %s807, %s805
        %s809 = smul.addr %s803, 32
        %s810 = sadd.s32 %s808, %s809
        %s811 = smul.addr %s810, 4
        %s812 = scalar_lea.vmem %s3, %s811
      $region44: #{residual_block_forward.4} parent=39 // pred_fallthru
        _
    $region40: #{residual_block_forward.4} parent=5 // pred_fallthru
      _
  $region6: #{residual_block_forward.4} parent=0 // loop_footer
    %s13 = sadd.s32 1, %s9
  $region7: #{residual_block_forward.4} parent=0 // loop_footer_branch
    %8 = sbr.rel target = $region3
  $region8: #{residual_block_forward.4} parent=0 // loop_exit
    _

// kernel: residual_block_forward.5
$region0: #{residual_block_forward.5}
  #allocation0 [shape = 'u32[]', space=smem, size = 0x4, offset = 0x4, fixed_abs, tag = 'smem constant byte address 0x4 - core index']
  #allocation1 [shape = 'u32[144,128]{1,0:T(1,128)}', space=vmem, size = 0x12000, scoped, tag = 'internal scratch']
  %s0 = inlined_call_operand.vmem [shape: bf16[2,256,128], index: 0, kind: input, shape index: {}]
  %s1 = inlined_call_operand.vmem [shape: bf16[128,128], index: 1, kind: input, shape index: {}]
  %s2 = inlined_call_operand.vmem [shape: f32[1,128], index: 2, kind: input, shape index: {}]
  %s3 = inlined_call_operand.vmem [shape: bf16[2,256,128], index: 3, kind: input, shape index: {}]
  %s4 = inlined_call_operand.vmem [shape: f32[2,256,128], index: 4, kind: output, shape index: {}]
  %s5 = sld [smem:[#allocation0]]
  $region49: #{residual_block_forward.5} parent=0
    _
  %s7 = ssub.s32 1, %s5
  %s8 = scalar_select 0, %s7, %s5
  loop: start=0, step=1, limit=4
  $region2: #{residual_block_forward.5} parent=0 // loop_pre_header
    _
  $region3: #{residual_block_forward.5} parent=0 // loop_header
    %s10 = sphi 0, %s14
    %p11 = scmp.ge.s32.totalorder %s10, 4
    %s17 = sphi 0, %s36
    %s18 = sphi 0, %s32
    %s19 = sphi 0, %s28
    %s20 = sphi 0, %s17
    %s21 = sphi 0, %s18
    %s22 = sphi 0, %s19
    %s23 = sphi 0, %s20
    %s24 = sphi 0, %s21
    %s25 = sphi 0, %s22
    %s41 = sphi 0, %s43
    %s44 = sphi 0, %s41
    %s45 = sphi 0, %s44
    %s61 = sphi 0, %s45
    %s67 = sphi 0, %s69
    %s70 = sphi 0, %s67
    %s71 = sphi 0, %s70
    %s87 = sphi 0, %s71
    %s93 = sphi 0, %s95
    %s96 = sphi 0, %s93
    %s97 = sphi 0, %s96
    %s113 = sphi 0, %s97
    %s123 = sphi 0, %s125
    %s126 = sphi 0, %s123
    %s127 = sphi 0, %s126
    %s143 = sphi 0, %s127
    %s153 = sphi 0, %s155
    %s156 = sphi 0, %s153
    %s157 = sphi 0, %s156
    %s173 = sphi 0, %s157
  $region4: #{residual_block_forward.5} parent=0 // loop_header_branch
    %13 = sbr.rel (%p11) target = $region8
  $region5: #{residual_block_forward.5} parent=0 // loop_body
    %s15 = ssub.s32 %s10, 1
    %s16 = ssub.s32 %s10, 2
    %s26 = sadd.s32 1, %s19
    %p27 = scmp.ge.s32.totalorder %s26, 1
    %s28 = scalar_select %p27, 0, %s26
    %s29 = sadd.s32 1, %s18
    %s30 = scalar_select %p27, %s29, %s18
    %p31 = scmp.ge.s32.totalorder %s30, 2
    %s32 = scalar_select %p31, 0, %s30
    %s33 = sadd.s32 1, %s17
    %s34 = scalar_select %p31, %s33, %s17
    %p35 = scmp.ge.s32.totalorder %s34, 1
    %s36 = scalar_select %p35, 0, %s34
    %s37 = ssub.s32 %s18, %s32
    %s38 = ssub.s32 %s19, %s28
    %s39 = sor.u32 %s37, %s38
    %p40 = scmp.eq.s32.totalorder %s39, 0
    %s42 = sadd.s32 %s41, 1
    %s43 = scalar_select %p40, %s41, %s42
    %p46 = pneg %p40
    %p47 = scmp.eq.s32.totalorder %s10, 1
    %p48 = por %p46, %p47
    %p49 = scmp.ne.s32.totalorder %s41, %s44
    %p50 = scmp.eq.s32.totalorder %s10, 0
    %p51 = por %p49, %p50
    %p52 = scmp.ne.s32.totalorder %s41, %s44
    %p53 = scmp.eq.s32.totalorder %s15, 1
    %p54 = por %p52, %p53
    %p55 = scmp.ne.s32.totalorder %s44, %s45
    %p56 = scmp.eq.s32.totalorder %s15, 0
    %p57 = por %p55, %p56
    %p58 = scmp.ne.s32.totalorder %s44, %s45
    %p59 = scmp.eq.s32.totalorder %s16, 1
    %p60 = por %p58, %p59
    %p62 = scmp.ne.s32.totalorder %s45, %s61
    %p63 = scmp.eq.s32.totalorder %s16, 0
    %p64 = por %p62, %p63
    %s65 = ssub.s32 %s17, %s36
    %p66 = scmp.eq.s32.totalorder %s65, 0
    %s68 = sadd.s32 %s67, 1
    %s69 = scalar_select %p66, %s67, %s68
    %p72 = pneg %p66
    %p73 = scmp.eq.s32.totalorder %s10, 1
    %p74 = por %p72, %p73
    %p75 = scmp.ne.s32.totalorder %s67, %s70
    %p76 = scmp.eq.s32.totalorder %s10, 0
    %p77 = por %p75, %p76
    %p78 = scmp.ne.s32.totalorder %s67, %s70
    %p79 = scmp.eq.s32.totalorder %s15, 1
    %p80 = por %p78, %p79
    %p81 = scmp.ne.s32.totalorder %s70, %s71
    %p82 = scmp.eq.s32.totalorder %s15, 0
    %p83 = por %p81, %p82
    %p84 = scmp.ne.s32.totalorder %s70, %s71
    %p85 = scmp.eq.s32.totalorder %s16, 1
    %p86 = por %p84, %p85
    %p88 = scmp.ne.s32.totalorder %s71, %s87
    %p89 = scmp.eq.s32.totalorder %s16, 0
    %p90 = por %p88, %p89
    %s91 = ssub.s32 %s17, %s36
    %p92 = scmp.eq.s32.totalorder %s91, 0
    %s94 = sadd.s32 %s93, 1
    %s95 = scalar_select %p92, %s93, %s94
    %p98 = pneg %p92
    %p99 = scmp.eq.s32.totalorder %s10, 1
    %p100 = por %p98, %p99
    %p101 = scmp.ne.s32.totalorder %s93, %s96
    %p102 = scmp.eq.s32.totalorder %s10, 0
    %p103 = por %p101, %p102
    %p104 = scmp.ne.s32.totalorder %s93, %s96
    %p105 = scmp.eq.s32.totalorder %s15, 1
    %p106 = por %p104, %p105
    %p107 = scmp.ne.s32.totalorder %s96, %s97
    %p108 = scmp.eq.s32.totalorder %s15, 0
    %p109 = por %p107, %p108
    %p110 = scmp.ne.s32.totalorder %s96, %s97
    %p111 = scmp.eq.s32.totalorder %s16, 1
    %p112 = por %p110, %p111
    %p114 = scmp.ne.s32.totalorder %s97, %s113
    %p115 = scmp.eq.s32.totalorder %s16, 0
    %p116 = por %p114, %p115
    %s117 = ssub.s32 %s18, %s32
    %s118 = ssub.s32 %s19, %s28
    %s119 = sor.u32 %s117, %s118
    %s120 = ssub.s32 %s17, %s36
    %s121 = sor.u32 %s119, %s120
    %p122 = scmp.eq.s32.totalorder %s121, 0
    %s124 = sadd.s32 %s123, 1
    %s125 = scalar_select %p122, %s123, %s124
    %p128 = pneg %p122
    %p129 = scmp.eq.s32.totalorder %s10, 1
    %p130 = por %p128, %p129
    %p131 = scmp.ne.s32.totalorder %s123, %s126
    %p132 = scmp.eq.s32.totalorder %s10, 0
    %p133 = por %p131, %p132
    %p134 = scmp.ne.s32.totalorder %s123, %s126
    %p135 = scmp.eq.s32.totalorder %s15, 1
    %p136 = por %p134, %p135
    %p137 = scmp.ne.s32.totalorder %s126, %s127
    %p138 = scmp.eq.s32.totalorder %s15, 0
    %p139 = por %p137, %p138
    %p140 = scmp.ne.s32.totalorder %s126, %s127
    %p141 = scmp.eq.s32.totalorder %s16, 1
    %p142 = por %p140, %p141
    %p144 = scmp.ne.s32.totalorder %s127, %s143
    %p145 = scmp.eq.s32.totalorder %s16, 0
    %p146 = por %p144, %p145
    %s147 = ssub.s32 %s18, %s32
    %s148 = ssub.s32 %s19, %s28
    %s149 = sor.u32 %s147, %s148
    %s150 = ssub.s32 %s17, %s36
    %s151 = sor.u32 %s149, %s150
    %p152 = scmp.eq.s32.totalorder %s151, 0
    %s154 = sadd.s32 %s153, 1
    %s155 = scalar_select %p152, %s153, %s154
    %p158 = pneg %p152
    %p159 = scmp.eq.s32.totalorder %s10, 1
    %p160 = por %p158, %p159
    %p161 = scmp.ne.s32.totalorder %s153, %s156
    %p162 = scmp.eq.s32.totalorder %s10, 0
    %p163 = por %p161, %p162
    %p164 = scmp.ne.s32.totalorder %s153, %s156
    %p165 = scmp.eq.s32.totalorder %s15, 1
    %p166 = por %p164, %p165
    %p167 = scmp.ne.s32.totalorder %s156, %s157
    %p168 = scmp.eq.s32.totalorder %s15, 0
    %p169 = por %p167, %p168
    %p170 = scmp.ne.s32.totalorder %s156, %s157
    %p171 = scmp.eq.s32.totalorder %s16, 1
    %p172 = por %p170, %p171
    %p174 = scmp.ne.s32.totalorder %s157, %s173
    %p175 = scmp.eq.s32.totalorder %s16, 0
    %p176 = por %p174, %p175
    %p177 = scmp.le.s32.totalorder 1, %s10
    %p178 = scmp.lt.s32.totalorder %s10, 3
    %p179 = pnand %p177, %p178
    %p180 = pneg %p179
    // Predicated region
    $region9: #{residual_block_forward.5} parent=5 // pred_check
      _
    $region10: #{residual_block_forward.5} parent=5 // pred_check_branch
      %182 = sbr.rel (%p179) target = $region12
    $region11: #{residual_block_forward.5} parent=5 // pred_region
      %s183 = ssub.s32 %s10, 1
      // Predicated region
      $region13: #{residual_block_forward.5} parent=11 // pred_check
        %p184 = pneg %p83
      $region14: #{residual_block_forward.5} parent=11 // pred_check_branch
        %186 = sbr.rel (%p184) target = $region16
      $region15: #{residual_block_forward.5} parent=11 // pred_region
        %p187 = scmp.lt.s32.totalorder %s20, 0
        %s188 = scalar_select %p187, %s20, 0
        %s189 = smul.addr %s188, 4
        %s190 = scalar_lea.vmem %s1, %s189
      $region16: #{residual_block_forward.5} parent=11 // pred_fallthru
        _
      // Predicated region
      $region17: #{residual_block_forward.5} parent=11 // pred_check
        %p191 = pneg %p109
      $region18: #{residual_block_forward.5} parent=11 // pred_check_branch
        %193 = sbr.rel (%p191) target = $region20
      $region19: #{residual_block_forward.5} parent=11 // pred_region
        %p194 = scmp.lt.s32.totalorder %s20, 0
        %s195 = scalar_select %p194, %s20, 0
        %s196 = scalar_lea.vmem %s2, %s195
      $region20: #{residual_block_forward.5} parent=11 // pred_fallthru
        _
    $region12: #{residual_block_forward.5} parent=5 // pred_fallthru
      _
    %p197 = scmp.lt.s32.totalorder %s10, 2
    // Predicated region
    $region21: #{residual_block_forward.5} parent=5 // pred_check
      %p198 = pneg %p197
    $region22: #{residual_block_forward.5} parent=5 // pred_check_branch
      %200 = sbr.rel (%p198) target = $region24
    $region23: #{residual_block_forward.5} parent=5 // pred_region
      // Predicated region
      $region25: #{residual_block_forward.5} parent=23 // pred_check
        %p201 = pneg %p51
      $region26: #{residual_block_forward.5} parent=23 // pred_check_branch
        %203 = sbr.rel (%p201) target = $region28
      $region27: #{residual_block_forward.5} parent=23 // pred_region
        %s204 = smul.u32 32, %s19
        %p205 = scmp.lt.s32.totalorder %s18, 1
        %s206 = scalar_select %p205, %s18, 1
        %p207 = scmp.lt.s32.totalorder %s204, 31
        %s208 = scalar_select %p207, %s204, 31
        %s209 = smul.addr %s206, 32
        %s210 = sadd.s32 %s208, %s209
        %s211 = smul.addr %s210, 4
        %s212 = scalar_lea.vmem %s0, %s211
        %s213 = smul.u32 32, %s19
      $region28: #{residual_block_forward.5} parent=23 // pred_fallthru
        _
      // Predicated region
      $region29: #{residual_block_forward.5} parent=23 // pred_check
        %p214 = pneg %p133
      $region30: #{residual_block_forward.5} parent=23 // pred_check_branch
        %216 = sbr.rel (%p214) target = $region32
      $region31: #{residual_block_forward.5} parent=23 // pred_region
        %s217 = smul.u32 32, %s19
        %p218 = scmp.lt.s32.totalorder %s18, 1
        %s219 = scalar_select %p218, %s18, 1
        %p220 = scmp.lt.s32.totalorder %s217, 31
        %s221 = scalar_select %p220, %s217, 31
        %p222 = scmp.lt.s32.totalorder %s17, 0
        %s223 = scalar_select %p222, %s17, 0
        %s224 = sadd.s32 %s223, %s221
        %s225 = smul.addr %s219, 32
        %s226 = sadd.s32 %s224, %s225
        %s227 = smul.addr %s226, 4
        %s228 = scalar_lea.vmem %s3, %s227
        %s229 = smul.u32 32, %s19
      $region32: #{residual_block_forward.5} parent=23 // pred_fallthru
        _
    $region24: #{residual_block_forward.5} parent=5 // pred_fallthru
      _
    %p230 = scmp.le.s32.totalorder 1, %s10
    %p231 = scmp.lt.s32.totalorder %s10, 3
    %p232 = pnand %p230, %p231
    %p233 = pneg %p232
    // Predicated region
    $region33: #{residual_block_forward.5} parent=5 // pred_check
      _
    $region34: #{residual_block_forward.5} parent=5 // pred_check_branch
      %235 = sbr.rel (%p232) target = $region36
    $region35: #{residual_block_forward.5} parent=5 // pred_region
      %s236 = ssub.s32 %s10, 1
      %s237 = smul.u32 32, %s22
      %p238 = scmp.lt.s32.totalorder %s21, 1
      %s239 = scalar_select %p238, %s21, 1
      %p240 = scmp.lt.s32.totalorder %s237, 31
      %s241 = scalar_select %p240, %s237, 31
      %s242 = smul.addr %s239, 32
      %s243 = sadd.s32 %s241, %s242
      %s244 = smul.addr %s243, 4
      %s245 = scalar_lea.vmem %s0, %s244
      %p246 = pneg %p57
      %p247 = pneg %p54
      %p248 = scmp.lt.s32.totalorder %s20, 0
      %s249 = scalar_select %p248, %s20, 0
      %s250 = smul.addr %s249, 4
      %s251 = scalar_lea.vmem %s1, %s250
      %p252 = pneg %p83
      %p253 = pneg %p80
      %p254 = scmp.lt.s32.totalorder %s20, 0
      %s255 = scalar_select %p254, %s20, 0
      %s256 = scalar_lea.vmem %s2, %s255
      %p257 = pneg %p109
      %p258 = pneg %p106
      %s259 = smul.u32 32, %s22
      %p260 = scmp.lt.s32.totalorder %s21, 1
      %s261 = scalar_select %p260, %s21, 1
      %p262 = scmp.lt.s32.totalorder %s259, 31
      %s263 = scalar_select %p262, %s259, 31
      %p264 = scmp.lt.s32.totalorder %s20, 0
      %s265 = scalar_select %p264, %s20, 0
      %s266 = sadd.s32 %s265, %s263
      %s267 = smul.addr %s261, 32
      %s268 = sadd.s32 %s266, %s267
      %s269 = smul.addr %s268, 4
      %s270 = scalar_lea.vmem %s3, %s269
      %p271 = pneg %p139
      %p272 = pneg %p136
      %p273 = pneg %p169
      %p274 = pneg %p166
      %s275 = smul.u32 32, %s22
      %p276 = scmp.lt.s32.totalorder %s21, 1
      %s277 = scalar_select %p276, %s21, 1
      %p278 = scmp.lt.s32.totalorder %s275, 31
      %s279 = scalar_select %p278, %s275, 31
      %p280 = scmp.lt.s32.totalorder %s20, 0
      %s281 = scalar_select %p280, %s20, 0
      %s282 = sadd.s32 %s281, %s279
      %s283 = smul.addr %s277, 32
      %s284 = sadd.s32 %s282, %s283
      %s285 = smul.addr %s284, 8
      %s286 = scalar_lea.vmem %s4, %s285
      %s287 = smul.u32 32, %s22
      %p288 = scmp.lt.s32.totalorder %s21, 1
      %s289 = scalar_select %p288, %s21, 1
      %p290 = scmp.lt.s32.totalorder %s287, 31
      %s291 = scalar_select %p290, %s287, 31
      %s292 = smul.addr %s289, 32
      %s293 = sadd.s32 %s291, %s292
      %s294 = smul.addr %s293, 4
      %s295 = scalar_lea.vmem %s0, %s294
      %s296 = smul.u32 32, %s22
      %p297 = scmp.lt.s32.totalorder %s20, 0
      %s298 = scalar_select %p297, %s20, 0
      %s299 = smul.addr %s298, 4
      %s300 = scalar_lea.vmem %s1, %s299
      %p301 = scmp.lt.s32.totalorder %s20, 0
      %s302 = scalar_select %p301, %s20, 0
      %s303 = scalar_lea.vmem %s2, %s302
      %s304 = smul.u32 32, %s22
      %p305 = scmp.lt.s32.totalorder %s21, 1
      %s306 = scalar_select %p305, %s21, 1
      %p307 = scmp.lt.s32.totalorder %s304, 31
      %s308 = scalar_select %p307, %s304, 31
      %p309 = scmp.lt.s32.totalorder %s20, 0
      %s310 = scalar_select %p309, %s20, 0
      %s311 = sadd.s32 %s310, %s308
      %s312 = smul.addr %s306, 32
      %s313 = sadd.s32 %s311, %s312
      %s314 = smul.addr %s313, 4
      %s315 = scalar_lea.vmem %s3, %s314
      %s316 = smul.u32 32, %s22
      %s317 = smul.u32 32, %s22
      %p318 = scmp.lt.s32.totalorder %s21, 1
      %s319 = scalar_select %p318, %s21, 1
      %p320 = scmp.lt.s32.totalorder %s317, 31
      %s321 = scalar_select %p320, %s317, 31
      %p322 = scmp.lt.s32.totalorder %s20, 0
      %s323 = scalar_select %p322, %s20, 0
      %s324 = sadd.s32 %s323, %s321
      %s325 = smul.addr %s319, 32
      %s326 = sadd.s32 %s324, %s325
      %s327 = smul.addr %s326, 8
      %s328 = scalar_lea.vmem %s4, %s327
      %s329 = smul.u32 32, %s22
      %v331 = vld [vmem:[%s295] sm:$0xf]
      %v332 = vld [vmem:[%s295 + $0x4] sm:$0xf]
      %v333 = vld [vmem:[%s295 + $0x8] sm:$0xf]
      %v334 = vld [vmem:[%s295 + $0xc] sm:$0xf]
      %v335 = vld [vmem:[%s295 + $0x10] sm:$0xf]
      %v336 = vld [vmem:[%s295 + $0x14] sm:$0xf]
      %v337 = vld [vmem:[%s295 + $0x18] sm:$0xf]
      %v338 = vld [vmem:[%s295 + $0x1c] sm:$0xf]
      %v339 = vld [vmem:[%s295 + $0x20] sm:$0xf]
      %v340 = vld [vmem:[%s295 + $0x24] sm:$0xf]
      %v341 = vld [vmem:[%s295 + $0x28] sm:$0xf]
      %v342 = vld [vmem:[%s295 + $0x2c] sm:$0xf]
      %v343 = vld [vmem:[%s295 + $0x30] sm:$0xf]
      %v344 = vld [vmem:[%s295 + $0x34] sm:$0xf]
      %v345 = vld [vmem:[%s295 + $0x38] sm:$0xf]
      %v346 = vld [vmem:[%s295 + $0x3c] sm:$0xf]
      %v347 = vld [vmem:[%s295 + $0x40] sm:$0xf]
      %v348 = vld [vmem:[%s295 + $0x44] sm:$0xf]
      %v349 = vld [vmem:[%s295 + $0x48] sm:$0xf]
      %v350 = vld [vmem:[%s295 + $0x4c] sm:$0xf]
      %v351 = vld [vmem:[%s295 + $0x50] sm:$0xf]
      %v352 = vld [vmem:[%s295 + $0x54] sm:$0xf]
      %v353 = vld [vmem:[%s295 + $0x58] sm:$0xf]
      %v354 = vld [vmem:[%s295 + $0x5c] sm:$0xf]
      %v355 = vld [vmem:[%s295 + $0x60] sm:$0xf]
      %v356 = vld [vmem:[%s295 + $0x64] sm:$0xf]
      %v357 = vld [vmem:[%s295 + $0x68] sm:$0xf]
      %v358 = vld [vmem:[%s295 + $0x6c] sm:$0xf]
      %v359 = vld [vmem:[%s295 + $0x70] sm:$0xf]
      %v360 = vld [vmem:[%s295 + $0x74] sm:$0xf]
      %v361 = vld [vmem:[%s295 + $0x78] sm:$0xf]
      %v362 = vld [vmem:[%s295 + $0x7c] sm:$0xf]
      %v363 = vld [vmem:[%s300] sm:$0xf]
      %v364 = vld [vmem:[%s300 + $0x4] sm:$0xf]
      %v365 = vld [vmem:[%s300 + $0x8] sm:$0xf]
      %v366 = vld [vmem:[%s300 + $0xc] sm:$0xf]
      %v367 = vld [vmem:[%s300 + $0x10] sm:$0xf]
      %v368 = vld [vmem:[%s300 + $0x14] sm:$0xf]
      %v369 = vld [vmem:[%s300 + $0x18] sm:$0xf]
      %v370 = vld [vmem:[%s300 + $0x1c] sm:$0xf]
      %v371 = vld [vmem:[%s300 + $0x20] sm:$0xf]
      %v372 = vld [vmem:[%s300 + $0x24] sm:$0xf]
      %v373 = vld [vmem:[%s300 + $0x28] sm:$0xf]
      %v374 = vld [vmem:[%s300 + $0x2c] sm:$0xf]
      %v375 = vld [vmem:[%s300 + $0x30] sm:$0xf]
      %v376 = vld [vmem:[%s300 + $0x34] sm:$0xf]
      %v377 = vld [vmem:[%s300 + $0x38] sm:$0xf]
      %v378 = vld [vmem:[%s300 + $0x3c] sm:$0xf]
      %v379 = vld [vmem:[%s303] sm:$0x1]
      %v381 = vlaneseq
      %v382 = vshrl.u32 %v381, 7
      %v383 = vsub.s32 0, %v382
      %v384 = vrot.slane %v379, %v383
      %v418 = vunpack.c.l.b16 %v331
      %v419 = vunpack.c.l.b16 %v332
      %v420 = vunpack.c.l.b16 %v333
      %v421 = vunpack.c.l.b16 %v334
      %v422 = vunpack.c.l.b16 %v335
      %v423 = vunpack.c.l.b16 %v336
      %v424 = vunpack.c.l.b16 %v337
      %v425 = vunpack.c.l.b16 %v338
      %v426 = vunpack.c.l.b16 %v339
      %v427 = vunpack.c.l.b16 %v340
      %v428 = vunpack.c.l.b16 %v341
      %v429 = vunpack.c.l.b16 %v342
      %v430 = vunpack.c.l.b16 %v343
      %v431 = vunpack.c.l.b16 %v344
      %v432 = vunpack.c.l.b16 %v345
      %v433 = vunpack.c.l.b16 %v346
      %v434 = vunpack.c.l.b16 %v347
      %v435 = vunpack.c.l.b16 %v348
      %v436 = vunpack.c.l.b16 %v349
      %v437 = vunpack.c.l.b16 %v350
      %v438 = vunpack.c.l.b16 %v351
      %v439 = vunpack.c.l.b16 %v352
      %v440 = vunpack.c.l.b16 %v353
      %v441 = vunpack.c.l.b16 %v354
      %v442 = vunpack.c.l.b16 %v355
      %v443 = vunpack.c.l.b16 %v356
      %v444 = vunpack.c.l.b16 %v357
      %v445 = vunpack.c.l.b16 %v358
      %v446 = vunpack.c.l.b16 %v359
      %v447 = vunpack.c.l.b16 %v360
      %v448 = vunpack.c.l.b16 %v361
      %v449 = vunpack.c.l.b16 %v362
      %v450 = vpack.c.b16 %v419, %v418
      %v451 = vpack.c.b16 %v421, %v420
      %v452 = vpack.c.b16 %v423, %v422
      %v453 = vpack.c.b16 %v425, %v424
      %v454 = vpack.c.b16 %v427, %v426
      %v455 = vpack.c.b16 %v429, %v428
      %v456 = vpack.c.b16 %v431, %v430
      %v457 = vpack.c.b16 %v433, %v432
      %v458 = vpack.c.b16 %v435, %v434
      %v459 = vpack.c.b16 %v437, %v436
      %v460 = vpack.c.b16 %v439, %v438
      %v461 = vpack.c.b16 %v441, %v440
      %v462 = vpack.c.b16 %v443, %v442
      %v463 = vpack.c.b16 %v445, %v444
      %v464 = vpack.c.b16 %v447, %v446
      %v465 = vpack.c.b16 %v449, %v448
      %v498 = vunpack.c.l.b16 %v363
      %v499 = vunpack.c.l.b16 %v364
      %v500 = vunpack.c.l.b16 %v365
      %v501 = vunpack.c.l.b16 %v366
      %v502 = vunpack.c.l.b16 %v367
      %v503 = vunpack.c.l.b16 %v368
      %v504 = vunpack.c.l.b16 %v369
      %v505 = vunpack.c.l.b16 %v370
      %v506 = vunpack.c.l.b16 %v371
      %v507 = vunpack.c.l.b16 %v372
      %v508 = vunpack.c.l.b16 %v373
      %v509 = vunpack.c.l.b16 %v374
      %v510 = vunpack.c.l.b16 %v375
      %v511 = vunpack.c.l.b16 %v376
      %v512 = vunpack.c.l.b16 %v377
      %v513 = vunpack.c.l.b16 %v378
      %v514 = vpack.c.b16 %v499, %v498
      %v515 = vpack.c.b16 %v501, %v500
      %v516 = vpack.c.b16 %v503, %v502
      %v517 = vpack.c.b16 %v505, %v504
      %v518 = vpack.c.b16 %v507, %v506
      %v519 = vpack.c.b16 %v509, %v508
      %v520 = vpack.c.b16 %v511, %v510
      %v521 = vpack.c.b16 %v513, %v512
      %530 = vmatprep.subr.bf16.mxu0 0
      %531 = vmatpush1.bf16.msra.mxu0 %v514
      %532 = vmatprep.subr.bf16.mxu0 0
      %533 = vmatpush1.bf16.msra.mxu0 %v515
      %534 = vmatprep.subr.bf16.mxu0 0
      %535 = vmatpush1.bf16.msra.mxu0 %v516
      %536 = vmatprep.subr.bf16.mxu0 0
      %537 = vmatpush1.bf16.msra.mxu0 %v517
      %538 = vmatprep.subr.bf16.mxu0 0
      %539 = vmatpush1.bf16.msra.mxu0 %v518
      %540 = vmatprep.subr.bf16.mxu0 0
      %541 = vmatpush1.bf16.msra.mxu0 %v519
      %542 = vmatprep.subr.bf16.mxu0 0
      %543 = vmatpush1.bf16.msra.mxu0 %v520
      %544 = vmatprep.subr.bf16.mxu0 0
      %545 = vmatpush1.bf16.msra.mxu0 %v521
      %546 = vmatprep.subr.bf16.mxu0 0
      %547 = vmatpush1.bf16.msra.mxu0 0
      %548 = vmatprep.subr.bf16.mxu0 0
      %549 = vmatpush1.bf16.msra.mxu0 0
      %550 = vmatprep.subr.bf16.mxu0 0
      %551 = vmatpush1.bf16.msra.mxu0 0
      %552 = vmatprep.subr.bf16.mxu0 0
      %553 = vmatpush1.bf16.msra.mxu0 0
      %554 = vmatprep.subr.bf16.mxu0 0
      %555 = vmatpush1.bf16.msra.mxu0 0
      %556 = vmatprep.subr.bf16.mxu0 0
      %557 = vmatpush1.bf16.msra.mxu0 0
      %558 = vmatprep.subr.bf16.mxu0 0
      %559 = vmatpush1.bf16.msra.mxu0 0
      %560 = vmatprep.subr.bf16.mxu0 0
      %561 = vmatpush1.bf16.msra.mxu0 0
      %562 = vmatprep.mubr.bf16.mxu0 0
      %563 = vmatmul.mubr.bf16.gmra.mrb[0].mxu0 %v450
      %v564 = vpop.f32.mrb[0].mxu0
      %v565 = vadd.f32 %v384, %v564
      %v566 = vpop.f32.mrb[0].mxu0
      %v567 = vpop.f32.mrb[0].mxu0
      %v568 = vadd.f32 %v384, %v567
      %v569 = vpop.f32.mrb[0].mxu0
      %570 = vmatprep.mubr.bf16.mxu0 0
      %571 = vmatmul.mubr.bf16.gmra.mrb[0].mxu0 %v451
      %v572 = vpop.f32.mrb[0].mxu0
      %v573 = vadd.f32 %v384, %v572
      %v574 = vpop.f32.mrb[0].mxu0
      %v575 = vpop.f32.mrb[0].mxu0
      %v576 = vadd.f32 %v384, %v575
      %v577 = vpop.f32.mrb[0].mxu0
      %578 = vmatprep.mubr.bf16.mxu0 0
      %579 = vmatmul.mubr.bf16.gmra.mrb[0].mxu0 %v452
      %v580 = vpop.f32.mrb[0].mxu0
      %v581 = vadd.f32 %v384, %v580
      %v582 = vpop.f32.mrb[0].mxu0
      %v583 = vpop.f32.mrb[0].mxu0
      %v584 = vadd.f32 %v384, %v583
      %v585 = vpop.f32.mrb[0].mxu0
      %586 = vmatprep.mubr.bf16.mxu0 0
      %587 = vmatmul.mubr.bf16.gmra.mrb[0].mxu0 %v453
      %v588 = vpop.f32.mrb[0].mxu0
      %v589 = vadd.f32 %v384, %v588
      %v590 = vpop.f32.mrb[0].mxu0
      %v591 = vpop.f32.mrb[0].mxu0
      %v592 = vadd.f32 %v384, %v591
      %v593 = vpop.f32.mrb[0].mxu0
      %594 = vmatprep.mubr.bf16.mxu0 0
      %595 = vmatmul.mubr.bf16.gmra.mrb[0].mxu0 %v454
      %v596 = vpop.f32.mrb[0].mxu0
      %v597 = vadd.f32 %v384, %v596
      %v598 = vpop.f32.mrb[0].mxu0
      %v599 = vpop.f32.mrb[0].mxu0
      %v600 = vadd.f32 %v384, %v599
      %v601 = vpop.f32.mrb[0].mxu0
      %602 = vmatprep.mubr.bf16.mxu0 0
      %603 = vmatmul.mubr.bf16.gmra.mrb[0].mxu0 %v455
      %v604 = vpop.f32.mrb[0].mxu0
      %v605 = vadd.f32 %v384, %v604
      %v606 = vpop.f32.mrb[0].mxu0
      %v607 = vpop.f32.mrb[0].mxu0
      %v608 = vadd.f32 %v384, %v607
      %v609 = vpop.f32.mrb[0].mxu0
      %610 = vmatprep.mubr.bf16.mxu0 0
      %611 = vmatmul.mubr.bf16.gmra.mrb[0].mxu0 %v456
      %v612 = vpop.f32.mrb[0].mxu0
      %v613 = vadd.f32 %v384, %v612
      %v614 = vpop.f32.mrb[0].mxu0
      %v615 = vpop.f32.mrb[0].mxu0
      %v616 = vadd.f32 %v384, %v615
      %v617 = vpop.f32.mrb[0].mxu0
      %618 = vmatprep.mubr.bf16.mxu0 0
      %619 = vmatmul.mubr.bf16.gmra.mrb[0].mxu0 %v457
      %v620 = vpop.f32.mrb[0].mxu0
      %v621 = vadd.f32 %v384, %v620
      %v622 = vpop.f32.mrb[0].mxu0
      %v623 = vpop.f32.mrb[0].mxu0
      %v624 = vadd.f32 %v384, %v623
      %v625 = vpop.f32.mrb[0].mxu0
      %626 = vmatprep.mubr.bf16.mxu0 0
      %627 = vmatmul.mubr.bf16.gmra.mrb[0].mxu0 %v458
      %v628 = vpop.f32.mrb[0].mxu0
      %v629 = vadd.f32 %v384, %v628
      %v630 = vpop.f32.mrb[0].mxu0
      %v631 = vpop.f32.mrb[0].mxu0
      %v632 = vadd.f32 %v384, %v631
      %v633 = vpop.f32.mrb[0].mxu0
      %634 = vmatprep.mubr.bf16.mxu0 0
      %635 = vmatmul.mubr.bf16.gmra.mrb[0].mxu0 %v459
      %v636 = vpop.f32.mrb[0].mxu0
      %v637 = vadd.f32 %v384, %v636
      %v638 = vpop.f32.mrb[0].mxu0
      %v639 = vpop.f32.mrb[0].mxu0
      %v640 = vadd.f32 %v384, %v639
      %v641 = vpop.f32.mrb[0].mxu0
      %642 = vmatprep.mubr.bf16.mxu0 0
      %643 = vmatmul.mubr.bf16.gmra.mrb[0].mxu0 %v460
      %v644 = vpop.f32.mrb[0].mxu0
      %v645 = vadd.f32 %v384, %v644
      %v646 = vpop.f32.mrb[0].mxu0
      %v647 = vpop.f32.mrb[0].mxu0
      %v648 = vadd.f32 %v384, %v647
      %v649 = vpop.f32.mrb[0].mxu0
      %650 = vmatprep.mubr.bf16.mxu0 0
      %651 = vmatmul.mubr.bf16.gmra.mrb[0].mxu0 %v461
      %v652 = vpop.f32.mrb[0].mxu0
      %v653 = vadd.f32 %v384, %v652
      %v654 = vpop.f32.mrb[0].mxu0
      %v655 = vpop.f32.mrb[0].mxu0
      %v656 = vadd.f32 %v384, %v655
      %v657 = vpop.f32.mrb[0].mxu0
      %658 = vmatprep.mubr.bf16.mxu0 0
      %659 = vmatmul.mubr.bf16.gmra.mrb[0].mxu0 %v462
      %v660 = vpop.f32.mrb[0].mxu0
      %v661 = vadd.f32 %v384, %v660
      %v662 = vpop.f32.mrb[0].mxu0
      %v663 = vpop.f32.mrb[0].mxu0
      %v664 = vadd.f32 %v384, %v663
      %v665 = vpop.f32.mrb[0].mxu0
      %666 = vmatprep.mubr.bf16.mxu0 0
      %667 = vmatmul.mubr.bf16.gmra.mrb[0].mxu0 %v463
      %v668 = vpop.f32.mrb[0].mxu0
      %v669 = vadd.f32 %v384, %v668
      %v670 = vpop.f32.mrb[0].mxu0
      %v671 = vpop.f32.mrb[0].mxu0
      %v672 = vadd.f32 %v384, %v671
      %v673 = vpop.f32.mrb[0].mxu0
      %674 = vmatprep.mubr.bf16.mxu0 0
      %675 = vmatmul.mubr.bf16.gmra.mrb[0].mxu0 %v464
      %v676 = vpop.f32.mrb[0].mxu0
      %v677 = vadd.f32 %v384, %v676
      %v678 = vpop.f32.mrb[0].mxu0
      %v679 = vpop.f32.mrb[0].mxu0
      %v680 = vadd.f32 %v384, %v679
      %v681 = vpop.f32.mrb[0].mxu0
      %682 = vmatprep.mubr.bf16.mxu0 0
      %683 = vmatmul.mubr.bf16.gmra.mrb[0].mxu0 %v465
      %v684 = vpop.f32.mrb[0].mxu0
      %v685 = vadd.f32 %v384, %v684
      %v686 = vpop.f32.mrb[0].mxu0
      %v687 = vpop.f32.mrb[0].mxu0
      %v688 = vadd.f32 %v384, %v687
      %v689 = vpop.f32.mrb[0].mxu0
      %690 = vdwg.mxu0
      %v691 = vld [vmem:[%s315] sm:$0xf]
      %v692 = vld [vmem:[%s315 + $0x4] sm:$0xf]
      %v693 = vld [vmem:[%s315 + $0x8] sm:$0xf]
      %v694 = vld [vmem:[%s315 + $0xc] sm:$0xf]
      %v695 = vld [vmem:[%s315 + $0x10] sm:$0xf]
      %v696 = vld [vmem:[%s315 + $0x14] sm:$0xf]
      %v697 = vld [vmem:[%s315 + $0x18] sm:$0xf]
      %v698 = vld [vmem:[%s315 + $0x1c] sm:$0xf]
      %v699 = vld [vmem:[%s315 + $0x20] sm:$0xf]
      %v700 = vld [vmem:[%s315 + $0x24] sm:$0xf]
      %v701 = vld [vmem:[%s315 + $0x28] sm:$0xf]
      %v702 = vld [vmem:[%s315 + $0x2c] sm:$0xf]
      %v703 = vld [vmem:[%s315 + $0x30] sm:$0xf]
      %v704 = vld [vmem:[%s315 + $0x34] sm:$0xf]
      %v705 = vld [vmem:[%s315 + $0x38] sm:$0xf]
      %v706 = vld [vmem:[%s315 + $0x3c] sm:$0xf]
      %v707 = vld [vmem:[%s315 + $0x40] sm:$0xf]
      %v708 = vld [vmem:[%s315 + $0x44] sm:$0xf]
      %v709 = vld [vmem:[%s315 + $0x48] sm:$0xf]
      %v710 = vld [vmem:[%s315 + $0x4c] sm:$0xf]
      %v711 = vld [vmem:[%s315 + $0x50] sm:$0xf]
      %v712 = vld [vmem:[%s315 + $0x54] sm:$0xf]
      %v713 = vld [vmem:[%s315 + $0x58] sm:$0xf]
      %v714 = vld [vmem:[%s315 + $0x5c] sm:$0xf]
      %v715 = vld [vmem:[%s315 + $0x60] sm:$0xf]
      %v716 = vld [vmem:[%s315 + $0x64] sm:$0xf]
      %v717 = vld [vmem:[%s315 + $0x68] sm:$0xf]
      %v718 = vld [vmem:[%s315 + $0x6c] sm:$0xf]
      %v719 = vld [vmem:[%s315 + $0x70] sm:$0xf]
      %v720 = vld [vmem:[%s315 + $0x74] sm:$0xf]
      %v721 = vld [vmem:[%s315 + $0x78] sm:$0xf]
      %v722 = vld [vmem:[%s315 + $0x7c] sm:$0xf]
      %v723 = vunpack.c.l.bf16 %v691
      %v724 = vunpack.c.l.bf16 %v692
      %v725 = vunpack.c.l.bf16 %v693
      %v726 = vunpack.c.l.bf16 %v694
      %v727 = vunpack.c.l.bf16 %v695
      %v728 = vunpack.c.l.bf16 %v696
      %v729 = vunpack.c.l.bf16 %v697
      %v730 = vunpack.c.l.bf16 %v698
      %v731 = vunpack.c.l.bf16 %v699
      %v732 = vunpack.c.l.bf16 %v700
      %v733 = vunpack.c.l.bf16 %v701
      %v734 = vunpack.c.l.bf16 %v702
      %v735 = vunpack.c.l.bf16 %v703
      %v736 = vunpack.c.l.bf16 %v704
      %v737 = vunpack.c.l.bf16 %v705
      %v738 = vunpack.c.l.bf16 %v706
      %v739 = vunpack.c.l.bf16 %v707
      %v740 = vunpack.c.l.bf16 %v708
      %v741 = vunpack.c.l.bf16 %v709
      %v742 = vunpack.c.l.bf16 %v710
      %v743 = vunpack.c.l.bf16 %v711
      %v744 = vunpack.c.l.bf16 %v712
      %v745 = vunpack.c.l.bf16 %v713
      %v746 = vunpack.c.l.bf16 %v714
      %v747 = vunpack.c.l.bf16 %v715
      %v748 = vunpack.c.l.bf16 %v716
      %v749 = vunpack.c.l.bf16 %v717
      %v750 = vunpack.c.l.bf16 %v718
      %v751 = vunpack.c.l.bf16 %v719
      %v752 = vunpack.c.l.bf16 %v720
      %v753 = vunpack.c.l.bf16 %v721
      %v754 = vunpack.c.l.bf16 %v722
      %v755 = vadd.f32 %v565, %v723
      %v756 = vadd.f32 %v568, %v724
      %v757 = vadd.f32 %v573, %v725
      %v758 = vadd.f32 %v576, %v726
      %v759 = vadd.f32 %v581, %v727
      %v760 = vadd.f32 %v584, %v728
      %v761 = vadd.f32 %v589, %v729
      %v762 = vadd.f32 %v592, %v730
      %v763 = vadd.f32 %v597, %v731
      %v764 = vadd.f32 %v600, %v732
      %v765 = vadd.f32 %v605, %v733
      %v766 = vadd.f32 %v608, %v734
      %v767 = vadd.f32 %v613, %v735
      %v768 = vadd.f32 %v616, %v736
      %v769 = vadd.f32 %v621, %v737
      %v770 = vadd.f32 %v624, %v738
      %v771 = vadd.f32 %v629, %v739
      %v772 = vadd.f32 %v632, %v740
      %v773 = vadd.f32 %v637, %v741
      %v774 = vadd.f32 %v640, %v742
      %v775 = vadd.f32 %v645, %v743
      %v776 = vadd.f32 %v648, %v744
      %v777 = vadd.f32 %v653, %v745
      %v778 = vadd.f32 %v656, %v746
      %v779 = vadd.f32 %v661, %v747
      %v780 = vadd.f32 %v664, %v748
      %v781 = vadd.f32 %v669, %v749
      %v782 = vadd.f32 %v672, %v750
      %v783 = vadd.f32 %v677, %v751
      %v784 = vadd.f32 %v680, %v752
      %v785 = vadd.f32 %v685, %v753
      %v786 = vadd.f32 %v688, %v754
      %v787 = vmax.f32 %v755, 0.0
      %v788 = vmax.f32 %v756, 0.0
      %v789 = vmax.f32 %v757, 0.0
      %v790 = vmax.f32 %v758, 0.0
      %v791 = vmax.f32 %v759, 0.0
      %v792 = vmax.f32 %v760, 0.0
      %v793 = vmax.f32 %v761, 0.0
      %v794 = vmax.f32 %v762, 0.0
      %v795 = vmax.f32 %v763, 0.0
      %v796 = vmax.f32 %v764, 0.0
      %v797 = vmax.f32 %v765, 0.0
      %v798 = vmax.f32 %v766, 0.0
      %v799 = vmax.f32 %v767, 0.0
      %v800 = vmax.f32 %v768, 0.0
      %v801 = vmax.f32 %v769, 0.0
      %v802 = vmax.f32 %v770, 0.0
      %v803 = vmax.f32 %v771, 0.0
      %v804 = vmax.f32 %v772, 0.0
      %v805 = vmax.f32 %v773, 0.0
      %v806 = vmax.f32 %v774, 0.0
      %v807 = vmax.f32 %v775, 0.0
      %v808 = vmax.f32 %v776, 0.0
      %v809 = vmax.f32 %v777, 0.0
      %v810 = vmax.f32 %v778, 0.0
      %v811 = vmax.f32 %v779, 0.0
      %v812 = vmax.f32 %v780, 0.0
      %v813 = vmax.f32 %v781, 0.0
      %v814 = vmax.f32 %v782, 0.0
      %v815 = vmax.f32 %v783, 0.0
      %v816 = vmax.f32 %v784, 0.0
      %v817 = vmax.f32 %v785, 0.0
      %v818 = vmax.f32 %v786, 0.0
      %819 = vst [vmem:[%s328] sm:$0xff] %v787
      %820 = vst [vmem:[%s328 + $0x8] sm:$0xff] %v788
      %821 = vst [vmem:[%s328 + $0x10] sm:$0xff] %v789
      %822 = vst [vmem:[%s328 + $0x18] sm:$0xff] %v790
      %823 = vst [vmem:[%s328 + $0x20] sm:$0xff] %v791
      %824 = vst [vmem:[%s328 + $0x28] sm:$0xff] %v792
      %825 = vst [vmem:[%s328 + $0x30] sm:$0xff] %v793
      %826 = vst [vmem:[%s328 + $0x38] sm:$0xff] %v794
      %827 = vst [vmem:[%s328 + $0x40] sm:$0xff] %v795
      %828 = vst [vmem:[%s328 + $0x48] sm:$0xff] %v796
      %829 = vst [vmem:[%s328 + $0x50] sm:$0xff] %v797
      %830 = vst [vmem:[%s328 + $0x58] sm:$0xff] %v798
      %831 = vst [vmem:[%s328 + $0x60] sm:$0xff] %v799
      %832 = vst [vmem:[%s328 + $0x68] sm:$0xff] %v800
      %833 = vst [vmem:[%s328 + $0x70] sm:$0xff] %v801
      %834 = vst [vmem:[%s328 + $0x78] sm:$0xff] %v802
      %835 = vst [vmem:[%s328 + $0x80] sm:$0xff] %v803
      %836 = vst [vmem:[%s328 + $0x88] sm:$0xff] %v804
      %837 = vst [vmem:[%s328 + $0x90] sm:$0xff] %v805
      %838 = vst [vmem:[%s328 + $0x98] sm:$0xff] %v806
      %839 = vst [vmem:[%s328 + $0xa0] sm:$0xff] %v807
      %840 = vst [vmem:[%s328 + $0xa8] sm:$0xff] %v808
      %841 = vst [vmem:[%s328 + $0xb0] sm:$0xff] %v809
      %842 = vst [vmem:[%s328 + $0xb8] sm:$0xff] %v810
      %843 = vst [vmem:[%s328 + $0xc0] sm:$0xff] %v811
      %844 = vst [vmem:[%s328 + $0xc8] sm:$0xff] %v812
      %845 = vst [vmem:[%s328 + $0xd0] sm:$0xff] %v813
      %846 = vst [vmem:[%s328 + $0xd8] sm:$0xff] %v814
      %847 = vst [vmem:[%s328 + $0xe0] sm:$0xff] %v815
      %848 = vst [vmem:[%s328 + $0xe8] sm:$0xff] %v816
      %849 = vst [vmem:[%s328 + $0xf0] sm:$0xff] %v817
      %850 = vst [vmem:[%s328 + $0xf8] sm:$0xff] %v818
      %s851 = smul.u32 32, %s22
      %p852 = scmp.lt.s32.totalorder %s21, 1
      %s853 = scalar_select %p852, %s21, 1
      %p854 = scmp.lt.s32.totalorder %s851, 31
      %s855 = scalar_select %p854, %s851, 31
      %p856 = scmp.lt.s32.totalorder %s20, 0
      %s857 = scalar_select %p856, %s20, 0
      %s858 = sadd.s32 %s857, %s855
      %s859 = smul.addr %s853, 32
      %s860 = sadd.s32 %s858, %s859
      %s861 = smul.addr %s860, 8
      %s862 = scalar_lea.vmem %s4, %s861
      // Predicated region
      $region37: #{residual_block_forward.5} parent=35 // pred_check
        %p863 = pneg %p166
      $region38: #{residual_block_forward.5} parent=35 // pred_check_branch
        %865 = sbr.rel (%p863) target = $region40
      $region39: #{residual_block_forward.5} parent=35 // pred_region
        %s866 = smul.u32 32, %s22
      $region40: #{residual_block_forward.5} parent=35 // pred_fallthru
        _
    $region36: #{residual_block_forward.5} parent=5 // pred_fallthru
      _
    %p867 = scmp.le.s32.totalorder 2, %s10
    // Predicated region
    $region41: #{residual_block_forward.5} parent=5 // pred_check
      %p868 = pneg %p867
    $region42: #{residual_block_forward.5} parent=5 // pred_check_branch
      %870 = sbr.rel (%p868) target = $region44
    $region43: #{residual_block_forward.5} parent=5 // pred_region
      %s871 = ssub.s32 %s10, 2
      // Predicated region
      $region45: #{residual_block_forward.5} parent=43 // pred_check
        %p872 = pneg %p172
      $region46: #{residual_block_forward.5} parent=43 // pred_check_branch
        %874 = sbr.rel (%p872) target = $region48
      $region47: #{residual_block_forward.5} parent=43 // pred_region
        %s875 = smul.u32 32, %s25
        %p876 = scmp.lt.s32.totalorder %s24, 1
        %s877 = scalar_select %p876, %s24, 1
        %p878 = scmp.lt.s32.totalorder %s875, 31
        %s879 = scalar_select %p878, %s875, 31
        %p880 = scmp.lt.s32.totalorder %s23, 0
        %s881 = scalar_select %p880, %s23, 0
        %s882 = sadd.s32 %s881, %s879
        %s883 = smul.addr %s877, 32
        %s884 = sadd.s32 %s882, %s883
        %s885 = smul.addr %s884, 8
        %s886 = scalar_lea.vmem %s4, %s885
      $region48: #{residual_block_forward.5} parent=43 // pred_fallthru
        _
    $region44: #{residual_block_forward.5} parent=5 // pred_fallthru
      _
  $region6: #{residual_block_forward.5} parent=0 // loop_footer
    %s14 = sadd.s32 1, %s10
  $region7: #{residual_block_forward.5} parent=0 // loop_footer_branch
    %9 = sbr.rel target = $region3
  $region8: #{residual_block_forward.5} parent=0 // loop_exit
    _

</llo_original>
